<compile_context>
chip_gen: v5e
topology: v5e:2x2
jax: 0.10.0
libtpu: 0.0.40
codegen_flags: <defaults>
</compile_context>

<pallas_src>
import numpy as np
import jax
import jax.numpy as jnp
from jax.experimental import pallas as pl
from jax.experimental.pallas import tpu as pltpu

_EPS = 1e-5


# ----------------------------------------------------------------------------
# helpers
# ----------------------------------------------------------------------------
def _pick_spatial_tile(n, cap=2048):
    """Largest multiple-of-128 divisor of n that is <= cap (else n itself)."""
    best = None
    t = 128
    while t <= min(n, cap):
        if n % t == 0:
            best = t
        t += 128
    return best if best is not None else n


def _pick_channel_tile(c, lane_block, budget_bytes=1 << 20):
    """Largest divisor of c that is (full dim or multiple of 8) and fits the budget."""
    for tc in range(c, 0, -1):
        if c % tc == 0 and (tc == c or tc % 8 == 0) \
                and tc * lane_block * 4 <= budget_bytes:
            return tc
    return c


def _interp_matrix_1d(n):
    """(2n, n) 1-D linear interpolation matrix for scale-2 upsampling, matching
    torch.nn.Upsample(mode='trilinear', align_corners=False):
      src = max(dst*0.5 - 0.25, 0), blend of floor/ceil neighbours (clamped)."""
    m = 2 * n
    u = np.zeros((m, n), dtype=np.float32)
    for o in range(m):
        src = max(o * 0.5 - 0.25, 0.0)
        i0 = int(np.floor(src))
        i1 = min(i0 + 1, n - 1)
        f = src - i0
        u[o, i0] += 1.0 - f
        u[o, i1] += f
    return u


# ----------------------------------------------------------------------------
# Kernel 1: attention coefficient
#   psi = sigmoid(BN(wp . relu(BN(Wg g) + BN(Wx x_ds))))
#
# Layout: channels in sublanes, spatial (flattened D*H*W) in lanes; batch inside
# the block.  Grid = (phase, spatial-tile), all "arbitrary" (stats carried in a
# VMEM scratch across the whole grid):
#   phase 0: accumulate sum / sum^2 of the two pre-BN conv outputs (per channel)
#   phase 1: recompute, normalize, ReLU, psi-conv; accumulate sum / sum^2 of psi_pre
#   phase 2: recompute, normalize psi_pre, sigmoid, write psi (lane-dense)
# ----------------------------------------------------------------------------
def _make_gate_kernel(f_g, f_x, f_int, n_total):
    inv_n = 1.0 / float(n_total)

    # column layout of the packed parameter array (F_int, K)
    c_wg = 0
    c_wx = f_g
    base = f_g + f_x
    c_bg, c_gg, c_btg = base + 0, base + 1, base + 2
    c_bx, c_gx, c_btx = base + 3, base + 4, base + 5
    c_wp = base + 6
    c_bp, c_gp, c_btp = base + 7, base + 8, base + 9

    def kernel(pc_ref, g_ref, xd_ref, psi_ref, stat_ref):
        ph = pl.program_id(0)
        t = pl.program_id(1)

        pc = pc_ref[...]                                   # (F_int, K)
        col3 = lambda c: pc[:, c:c + 1][None]              # (1, F_int, 1)
        s3 = lambda c: pc[0:1, c:c + 1][None]              # (1, 1, 1)

        g_blk = g_ref[...]                                 # (B, F_g, TS)
        x_blk = xd_ref[...]                                # (B, F_x, TS)

        # 1x1x1 convs as channel-unrolled VPU FMAs (tiny channel counts).
        gl = col3(c_wg) * g_blk[:, 0:1, :]
        for i in range(1, f_g):
            gl = gl + col3(c_wg + i) * g_blk[:, i:i + 1, :]
        gl = gl + col3(c_bg)                               # (B, F_int, TS)

        xl = col3(c_wx) * x_blk[:, 0:1, :]
        for i in range(1, f_x):
            xl = xl + col3(c_wx + i) * x_blk[:, i:i + 1, :]
        xl = xl + col3(c_bx)                               # (B, F_int, TS)

        def rsum(z):                                       # (B, C, TS) -> (C, 1)
            return jnp.sum(jnp.sum(z, axis=2, keepdims=True), axis=0)

        @pl.when((ph == 0) & (t == 0))
        def _init():
            stat_ref[...] = jnp.zeros_like(stat_ref)

        @pl.when(ph == 0)
        def _accum_conv_stats():
            stat_ref[:, 0:1] += rsum(gl)
            stat_ref[:, 1:2] += rsum(gl * gl)
            stat_ref[:, 2:3] += rsum(xl)
            stat_ref[:, 3:4] += rsum(xl * xl)

        def _psi_pre():
            st = stat_ref[...]
            mg = st[:, 0:1] * inv_n
            vg = jnp.maximum(st[:, 1:2] * inv_n - mg * mg, 0.0)
            mx = st[:, 2:3] * inv_n
            vx = jnp.maximum(st[:, 3:4] * inv_n - mx * mx, 0.0)
            gl_bn = (gl - mg[None]) * jax.lax.rsqrt(vg[None] + _EPS) \
                * col3(c_gg) + col3(c_btg)
            xl_bn = (xl - mx[None]) * jax.lax.rsqrt(vx[None] + _EPS) \
                * col3(c_gx) + col3(c_btx)
            act = jnp.maximum(gl_bn + xl_bn, 0.0)           # ReLU
            # psi conv: single output channel -> sublane reduction (no N=1 matmul)
            p = jnp.sum(col3(c_wp) * act, axis=1, keepdims=True) + s3(c_bp)  # (B,1,TS)
            return p, st

        @pl.when(ph == 1)
        def _accum_psi_stats():
            p, _ = _psi_pre()
            stat_ref[0:1, 4:5] += jnp.sum(jnp.sum(p, axis=2, keepdims=True), axis=0)
            stat_ref[0:1, 5:6] += jnp.sum(jnp.sum(p * p, axis=2, keepdims=True), axis=0)

        @pl.when(ph == 2)
        def _write_psi():
            p, st = _psi_pre()
            mp = st[0:1, 4:5] * inv_n
            vp = jnp.maximum(st[0:1, 5:6] * inv_n - mp * mp, 0.0)
            p_bn = (p - mp[None]) * jax.lax.rsqrt(vp[None] + _EPS) \
                * s3(c_gp) + s3(c_btp)
            # sigmoid: exp lands on the EUP; exact reciprocal keeps the numerics tight.
            psi_ref[...] = pl.reciprocal(1.0 + jnp.exp(-p_bn))

    return kernel


# ----------------------------------------------------------------------------
# Kernel 2a: separable trilinear x2 upsample of psi, one fine-depth plane per step.
#   d0/d1/frac come from scalar integer math on the fine-depth program id,
#   the two coarse planes are blended BEFORE the (Uh @ p @ Uw^T) matmuls
#   (linear interpolation commutes, so one matmul pair instead of two).
# ----------------------------------------------------------------------------
def _make_upsample_kernel(dg):
    def kernel(psi_ref, uh_ref, uwt_ref, o_ref):
        dz = pl.program_id(1)
        # src depth coord in quarter units: max(dz/2 - 1/4, 0)
        q = jnp.maximum(2 * dz - 1, 0)
        d0 = q // 4
        d1 = jnp.minimum(d0 + 1, dg - 1)
        frac = (q % 4).astype(jnp.float32) * 0.25

        p0 = psi_ref[d0]                                   # (Hg, Wg)
        p1 = psi_ref[d1]
        pd = p0 + frac * (p1 - p0)                         # depth blend (coarse)
        up = jnp.dot(jnp.dot(uh_ref[...], pd, preferred_element_type=jnp.float32),
                     uwt_ref[...], preferred_element_type=jnp.float32)  # (Hx, Wx)
        o_ref[...] = up

    return kernel


# ----------------------------------------------------------------------------
# Kernel 2b: lane-dense elementwise gating  out = x * psi_up (broadcast over C).
#   x / psi_up / out are viewed as (B, C, Dx*Hx*Wx) so the lane axis is a big
#   multiple-of-128 tile -> unmasked dense vector stores on the dominant traffic.
# ----------------------------------------------------------------------------
def _gate_mul_kernel(psi_ref, x_ref, o_ref):
    o_ref[...] = (x_ref[...] * psi_ref[...]).astype(o_ref.dtype)


# ----------------------------------------------------------------------------
# Wrapper
# ----------------------------------------------------------------------------
def attention_block_3d(g, x, params, *, sg_block=2048, sx_block=2048):
    B, F_g, Dg, Hg, Wg = g.shape
    Bx, F_x, Dx, Hx, Wx = x.shape
    assert Bx == B and (Dx, Hx, Wx) == (2 * Dg, 2 * Hg, 2 * Wg)
    F_int = params["wg"].shape[1]
    Sg = Dg * Hg * Wg
    Sx = Dx * Hx * Wx
    f32 = jnp.float32

    # ---- layout plumbing (free reshapes, no transposes) ------------------------
    g_rows = g.reshape(B, F_g, Sg).astype(f32)
    # stride-(2,2,2) sampling for the 1x1x1 W_x conv (touches 1/8 of x).
    # TODO(synk): fold this strided downsample into the gate kernel via strided DMA.
    xd_rows = x[:, :, ::2, ::2, ::2].reshape(B, F_x, Sg).astype(f32)

    # ---- pack every per-channel parameter into ONE (F_int, K) array ------------
    per_ch = jnp.stack([params["bg"], params["gamma_g"], params["beta_g"],
                        params["bx"], params["gamma_x"], params["beta_x"],
                        params["wp"]], axis=1)                           # (F_int, 7)
    psc = jnp.concatenate([params["bp"], params["gamma_p"], params["beta_p"]])
    pc = jnp.concatenate([params["wg"].T, params["wx"].T, per_ch,
                          jnp.broadcast_to(psc[None, :], (F_int, 3))],
                         axis=1).astype(f32)                             # (F_int, K)
    Kp = pc.shape[1]

    # ---- kernel 1: attention coefficients psi ----------------------------------
    ts = _pick_spatial_tile(Sg, sg_block)
    n_t = Sg // ts
    gate_kernel = _make_gate_kernel(F_g, F_x, F_int, B * Sg)

    psi3 = pl.pallas_call(
        gate_kernel,
        out_shape=jax.ShapeDtypeStruct((3, B, 1, Sg), f32),
        grid=(3, n_t),
        in_specs=[
            pl.BlockSpec((F_int, Kp), lambda p, t: (0, 0)),
            pl.BlockSpec((B, F_g, ts), lambda p, t: (0, 0, t)),
            pl.BlockSpec((B, F_x, ts), lambda p, t: (0, 0, t)),
        ],
        # one slab per phase: every output block is written exactly once, in grid
        # order; only the phase-2 slab is kept below.
        out_specs=pl.BlockSpec((None, B, 1, ts), lambda p, t: (p, 0, 0, t)),
        scratch_shapes=[pltpu.VMEM((F_int, 8), f32)],
        compiler_params=pltpu.CompilerParams(
            dimension_semantics=("arbitrary", "arbitrary")),
    )(pc, g_rows, xd_rows)
    psi = psi3[2].reshape(B, Dg, Hg, Wg)

    # ---- kernel 2a: separable trilinear x2 upsample of psi (tiny volume) -------
    uh = jnp.asarray(_interp_matrix_1d(Hg))                 # (Hx, Hg)
    uwt = jnp.asarray(_interp_matrix_1d(Wg).T)              # (Wg, Wx)

    psi_up = pl.pallas_call(
        _make_upsample_kernel(Dg),
        out_shape=jax.ShapeDtypeStruct((B, Dx, Hx, Wx), f32),
        grid=(B, Dx),
        in_specs=[
            pl.BlockSpec((None, Dg, Hg, Wg), lambda b, d: (b, 0, 0, 0)),
            pl.BlockSpec((Hx, Hg), lambda b, d: (0, 0)),
            pl.BlockSpec((Wg, Wx), lambda b, d: (0, 0)),
        ],
        out_specs=pl.BlockSpec((None, None, Hx, Wx), lambda b, d: (b, d, 0, 0)),
        compiler_params=pltpu.CompilerParams(
            dimension_semantics=("parallel", "parallel")),
    )(psi, uh, uwt)

    # ---- kernel 2b: lane-dense gating of x -------------------------------------
    x3 = x.reshape(B, F_x, Sx)
    psi_row = psi_up.reshape(B, 1, Sx)
    ts2 = _pick_spatial_tile(Sx, sx_block)
    n_s = Sx // ts2
    tc = _pick_channel_tile(F_x, ts2)
    n_c = F_x // tc

    out3 = pl.pallas_call(
        _gate_mul_kernel,
        out_shape=jax.ShapeDtypeStruct((B, F_x, Sx), x.dtype),
        grid=(B, n_c, n_s),
        in_specs=[
            pl.BlockSpec((None, 1, ts2), lambda b, c, s: (b, 0, s)),
            pl.BlockSpec((None, tc, ts2), lambda b, c, s: (b, c, s)),
        ],
        out_specs=pl.BlockSpec((None, tc, ts2), lambda b, c, s: (b, c, s)),
        compiler_params=pltpu.CompilerParams(
            dimension_semantics=("parallel", "parallel", "parallel")),
    )(psi_row, x3)

    return out3.reshape(B, F_x, Dx, Hx, Wx)


# ----------------------------------------------------------------------------
# Pure-JAX reference (NCDHW), for the correctness check.
# ----------------------------------------------------------------------------
def reference_forward(g, x, p):
    B, F_g, Dg, Hg, Wg = g.shape
    _, F_x, Dx, Hx, Wx = x.shape

    def conv1x1(inp, w, b):                                 # w: (Cin, Cout)
        return jnp.einsum("bcdhw,co->bodhw", inp, w) + b[None, :, None, None, None]

    def bn(z, gamma, beta):
        mean = jnp.mean(z, axis=(0, 2, 3, 4), keepdims=True)
        var = jnp.mean((z - mean) ** 2, axis=(0, 2, 3, 4), keepdims=True)
        zn = (z - mean) * jax.lax.rsqrt(var + _EPS)
        return zn * gamma[None, :, None, None, None] + beta[None, :, None, None, None]

    gl = bn(conv1x1(g, p["wg"], p["bg"]), p["gamma_g"], p["beta_g"])
    xd = x[:, :, ::2, ::2, ::2]
    xl = bn(conv1x1(xd, p["wx"], p["bx"]), p["gamma_x"], p["beta_x"])
    a = jnp.maximum(gl + xl, 0.0)
    ps = bn(conv1x1(a, p["wp"].reshape(-1, 1), p["bp"]), p["gamma_p"], p["beta_p"])
    ps = 1.0 / (1.0 + jnp.exp(-ps))                          # (B, 1, Dg, Hg, Wg)

    ud = jnp.asarray(_interp_matrix_1d(Dg))
    uh = jnp.asarray(_interp_matrix_1d(Hg))
    uw = jnp.asarray(_interp_matrix_1d(Wg))
    up = jnp.einsum("ad,bh,cw,ndhw->nabc", ud, uh, uw, ps[:, 0])   # (B, Dx, Hx, Wx)
    return x * up[:, None]


if __name__ == "__main__":
    B = 2
    F_g, F_x, F_int = 4, 4, 8
    Dg, Hg, Wg = 8, 8, 16            # gating-signal spatial dims (Sg = 1024)
    Dx, Hx, Wx = 2 * Dg, 2 * Hg, 2 * Wg

    key = jax.random.PRNGKey(0)
    ks = jax.random.split(key, 16)

    g = jax.random.normal(ks[0], (B, F_g, Dg, Hg, Wg), jnp.float32)
    x = jax.random.normal(ks[1], (B, F_x, Dx, Hx, Wx), jnp.float32)

    params = {
        # 1x1x1 conv weights stored as (Cin, Cout); biases / BN params as (Cout,)
        "wg": 0.3 * jax.random.normal(ks[2], (F_g, F_int), jnp.float32),
        "bg": 0.1 * jax.random.normal(ks[3], (F_int,), jnp.float32),
        "gamma_g": 1.0 + 0.1 * jax.random.normal(ks[4], (F_int,), jnp.float32),
        "beta_g": 0.1 * jax.random.normal(ks[5], (F_int,), jnp.float32),
        "wx": 0.3 * jax.random.normal(ks[6], (F_x, F_int), jnp.float32),
        "bx": 0.1 * jax.random.normal(ks[7], (F_int,), jnp.float32),
        "gamma_x": 1.0 + 0.1 * jax.random.normal(ks[8], (F_int,), jnp.float32),
        "beta_x": 0.1 * jax.random.normal(ks[9], (F_int,), jnp.float32),
        "wp": 0.3 * jax.random.normal(ks[10], (F_int,), jnp.float32),   # psi conv (F_int -> 1)
        "bp": 0.1 * jax.random.normal(ks[11], (1,), jnp.float32),
        "gamma_p": 1.0 + 0.1 * jax.random.normal(ks[12], (1,), jnp.float32),
        "beta_p": 0.1 * jax.random.normal(ks[13], (1,), jnp.float32),
    }

    out = attention_block_3d(g, x, params)
    out = jax.block_until_ready(out)

    ref = reference_forward(g, x, params)
    assert out.shape == x.shape
    np.testing.assert_allclose(np.asarray(out), np.asarray(ref), rtol=2e-3, atol=2e-3)

    print("KERNEL_OK")
</pallas_src>

<mosaic_0001>
module attributes {stable_mosaic.version = 11 : i64} {
  func.func @kernel(%arg0: i32, %arg1: i32, %arg2: memref<8x18xf32, #tpu.memory_space<vmem>>, %arg3: memref<2x4x1024xf32, #tpu.memory_space<vmem>>, %arg4: memref<2x4x1024xf32, #tpu.memory_space<vmem>>, %arg5: memref<1x2x1x1024xf32, #tpu.memory_space<vmem>>, %arg6: memref<8x8xf32, #tpu.memory_space<vmem>>) attributes {dimension_semantics = [#tpu.dimension_semantics<arbitrary>, #tpu.dimension_semantics<arbitrary>], iteration_bounds = array<i64: 3, 1>, scalar_prefetch = 0 : i64, scratch_operands = 1 : i64, tpu.core_type = #tpu.core_type<tc>, window_params = [{pipeline_mode = #tpu.pipeline_mode<synchronous>, transform_indices = @transform_0, window_bounds = array<i64: 8, 18>}, {transform_indices = @transform_1, window_bounds = array<i64: 2, 4, 1024>}, {transform_indices = @transform_2, window_bounds = array<i64: 2, 4, 1024>}, {transform_indices = @transform_3, window_bounds = array<i64: 1, 2, 1, 1024>}]} {
    %c0 = arith.constant 0 : index
    %c0_0 = arith.constant 0 : index
    %0 = vector.load %arg2[%c0, %c0_0] : memref<8x18xf32, #tpu.memory_space<vmem>>, vector<8x18xf32>
    %c0_1 = arith.constant 0 : index
    %c0_2 = arith.constant 0 : index
    %c0_3 = arith.constant 0 : index
    %1 = vector.load %arg3[%c0_1, %c0_2, %c0_3] : memref<2x4x1024xf32, #tpu.memory_space<vmem>>, vector<2x4x1024xf32>
    %c0_4 = arith.constant 0 : index
    %c0_5 = arith.constant 0 : index
    %c0_6 = arith.constant 0 : index
    %2 = vector.load %arg4[%c0_4, %c0_5, %c0_6] : memref<2x4x1024xf32, #tpu.memory_space<vmem>>, vector<2x4x1024xf32>
    %3 = vector.extract_strided_slice %0 {offsets = [0, 0], sizes = [8, 1], strides = [1, 1]} : vector<8x18xf32> to vector<8x1xf32>
    %4 = vector.shape_cast %3 : vector<8x1xf32> to vector<1x8x1xf32>
    %5 = vector.extract_strided_slice %1 {offsets = [0, 0, 0], sizes = [2, 1, 1024], strides = [1, 1, 1]} : vector<2x4x1024xf32> to vector<2x1x1024xf32>
    %6 = vector.broadcast %4 : vector<1x8x1xf32> to vector<2x8x1024xf32>
    %7 = vector.broadcast %5 : vector<2x1x1024xf32> to vector<2x8x1024xf32>
    %8 = arith.mulf %6, %7 : vector<2x8x1024xf32>
    %9 = vector.extract_strided_slice %0 {offsets = [0, 1], sizes = [8, 1], strides = [1, 1]} : vector<8x18xf32> to vector<8x1xf32>
    %10 = vector.shape_cast %9 : vector<8x1xf32> to vector<1x8x1xf32>
    %11 = vector.extract_strided_slice %1 {offsets = [0, 1, 0], sizes = [2, 1, 1024], strides = [1, 1, 1]} : vector<2x4x1024xf32> to vector<2x1x1024xf32>
    %12 = vector.broadcast %10 : vector<1x8x1xf32> to vector<2x8x1024xf32>
    %13 = vector.broadcast %11 : vector<2x1x1024xf32> to vector<2x8x1024xf32>
    %14 = arith.mulf %12, %13 : vector<2x8x1024xf32>
    %15 = arith.addf %8, %14 : vector<2x8x1024xf32>
    %16 = vector.extract_strided_slice %0 {offsets = [0, 2], sizes = [8, 1], strides = [1, 1]} : vector<8x18xf32> to vector<8x1xf32>
    %17 = vector.shape_cast %16 : vector<8x1xf32> to vector<1x8x1xf32>
    %18 = vector.extract_strided_slice %1 {offsets = [0, 2, 0], sizes = [2, 1, 1024], strides = [1, 1, 1]} : vector<2x4x1024xf32> to vector<2x1x1024xf32>
    %19 = vector.broadcast %17 : vector<1x8x1xf32> to vector<2x8x1024xf32>
    %20 = vector.broadcast %18 : vector<2x1x1024xf32> to vector<2x8x1024xf32>
    %21 = arith.mulf %19, %20 : vector<2x8x1024xf32>
    %22 = arith.addf %15, %21 : vector<2x8x1024xf32>
    %23 = vector.extract_strided_slice %0 {offsets = [0, 3], sizes = [8, 1], strides = [1, 1]} : vector<8x18xf32> to vector<8x1xf32>
    %24 = vector.shape_cast %23 : vector<8x1xf32> to vector<1x8x1xf32>
    %25 = vector.extract_strided_slice %1 {offsets = [0, 3, 0], sizes = [2, 1, 1024], strides = [1, 1, 1]} : vector<2x4x1024xf32> to vector<2x1x1024xf32>
    %26 = vector.broadcast %24 : vector<1x8x1xf32> to vector<2x8x1024xf32>
    %27 = vector.broadcast %25 : vector<2x1x1024xf32> to vector<2x8x1024xf32>
    %28 = arith.mulf %26, %27 : vector<2x8x1024xf32>
    %29 = arith.addf %22, %28 : vector<2x8x1024xf32>
    %30 = vector.extract_strided_slice %0 {offsets = [0, 8], sizes = [8, 1], strides = [1, 1]} : vector<8x18xf32> to vector<8x1xf32>
    %31 = vector.shape_cast %30 : vector<8x1xf32> to vector<1x8x1xf32>
    %32 = vector.broadcast %31 : vector<1x8x1xf32> to vector<2x8x1024xf32>
    %33 = arith.addf %29, %32 : vector<2x8x1024xf32>
    %34 = vector.extract_strided_slice %0 {offsets = [0, 4], sizes = [8, 1], strides = [1, 1]} : vector<8x18xf32> to vector<8x1xf32>
    %35 = vector.shape_cast %34 : vector<8x1xf32> to vector<1x8x1xf32>
    %36 = vector.extract_strided_slice %2 {offsets = [0, 0, 0], sizes = [2, 1, 1024], strides = [1, 1, 1]} : vector<2x4x1024xf32> to vector<2x1x1024xf32>
    %37 = vector.broadcast %35 : vector<1x8x1xf32> to vector<2x8x1024xf32>
    %38 = vector.broadcast %36 : vector<2x1x1024xf32> to vector<2x8x1024xf32>
    %39 = arith.mulf %37, %38 : vector<2x8x1024xf32>
    %40 = vector.extract_strided_slice %0 {offsets = [0, 5], sizes = [8, 1], strides = [1, 1]} : vector<8x18xf32> to vector<8x1xf32>
    %41 = vector.shape_cast %40 : vector<8x1xf32> to vector<1x8x1xf32>
    %42 = vector.extract_strided_slice %2 {offsets = [0, 1, 0], sizes = [2, 1, 1024], strides = [1, 1, 1]} : vector<2x4x1024xf32> to vector<2x1x1024xf32>
    %43 = vector.broadcast %41 : vector<1x8x1xf32> to vector<2x8x1024xf32>
    %44 = vector.broadcast %42 : vector<2x1x1024xf32> to vector<2x8x1024xf32>
    %45 = arith.mulf %43, %44 : vector<2x8x1024xf32>
    %46 = arith.addf %39, %45 : vector<2x8x1024xf32>
    %47 = vector.extract_strided_slice %0 {offsets = [0, 6], sizes = [8, 1], strides = [1, 1]} : vector<8x18xf32> to vector<8x1xf32>
    %48 = vector.shape_cast %47 : vector<8x1xf32> to vector<1x8x1xf32>
    %49 = vector.extract_strided_slice %2 {offsets = [0, 2, 0], sizes = [2, 1, 1024], strides = [1, 1, 1]} : vector<2x4x1024xf32> to vector<2x1x1024xf32>
    %50 = vector.broadcast %48 : vector<1x8x1xf32> to vector<2x8x1024xf32>
    %51 = vector.broadcast %49 : vector<2x1x1024xf32> to vector<2x8x1024xf32>
    %52 = arith.mulf %50, %51 : vector<2x8x1024xf32>
    %53 = arith.addf %46, %52 : vector<2x8x1024xf32>
    %54 = vector.extract_strided_slice %0 {offsets = [0, 7], sizes = [8, 1], strides = [1, 1]} : vector<8x18xf32> to vector<8x1xf32>
    %55 = vector.shape_cast %54 : vector<8x1xf32> to vector<1x8x1xf32>
    %56 = vector.extract_strided_slice %2 {offsets = [0, 3, 0], sizes = [2, 1, 1024], strides = [1, 1, 1]} : vector<2x4x1024xf32> to vector<2x1x1024xf32>
    %57 = vector.broadcast %55 : vector<1x8x1xf32> to vector<2x8x1024xf32>
    %58 = vector.broadcast %56 : vector<2x1x1024xf32> to vector<2x8x1024xf32>
    %59 = arith.mulf %57, %58 : vector<2x8x1024xf32>
    %60 = arith.addf %53, %59 : vector<2x8x1024xf32>
    %61 = vector.extract_strided_slice %0 {offsets = [0, 11], sizes = [8, 1], strides = [1, 1]} : vector<8x18xf32> to vector<8x1xf32>
    %62 = vector.shape_cast %61 : vector<8x1xf32> to vector<1x8x1xf32>
    %63 = vector.broadcast %62 : vector<1x8x1xf32> to vector<2x8x1024xf32>
    %64 = arith.addf %60, %63 : vector<2x8x1024xf32>
    %c0_i32 = arith.constant 0 : i32
    %65 = arith.cmpi eq, %arg0, %c0_i32 : i32
    %c0_i32_7 = arith.constant 0 : i32
    %66 = arith.cmpi eq, %arg1, %c0_i32_7 : i32
    %67 = arith.andi %65, %66 : i1
    %68 = arith.extui %67 : i1 to i32
    %c0_i32_8 = arith.constant 0 : i32
    %69 = arith.cmpi ne, %68, %c0_i32_8 : i32
    scf.if %69 {
      %cst = arith.constant 0.000000e+00 : f32
      %79 = vector.broadcast %cst : f32 to vector<8x8xf32>
      %c0_13 = arith.constant 0 : index
      %c0_14 = arith.constant 0 : index
      %80 = vector.load %arg6[%c0_13, %c0_14] : memref<8x8xf32, #tpu.memory_space<vmem>>, vector<8x8xf32>
      tpu.vector_store %arg6[%c0_13, %c0_14], %79 {strides = array<i32>} : memref<8x8xf32, #tpu.memory_space<vmem>>, vector<8x8xf32>,
    } else {
    }
    %c0_i32_9 = arith.constant 0 : i32
    %70 = arith.cmpi eq, %arg0, %c0_i32_9 : i32
    %71 = arith.extui %70 : i1 to i32
    %c0_i32_10 = arith.constant 0 : i32
    %72 = arith.cmpi ne, %71, %c0_i32_10 : i32
    scf.if %72 {
      %c0_13 = arith.constant 0 : index
      %c0_14 = arith.constant 0 : index
      %79 = vector.load %arg6[%c0_13, %c0_14] : memref<8x8xf32, #tpu.memory_space<vmem>>, vector<8x1xf32>
      %cst = arith.constant dense<0.000000e+00> : vector<2x8xf32>
      %80 = vector.multi_reduction <add>, %33, %cst [2] : vector<2x8x1024xf32> to vector<2x8xf32>
      %81 = vector.shape_cast %80 : vector<2x8xf32> to vector<2x8x1xf32>
      %cst_15 = arith.constant dense<0.000000e+00> : vector<8x1xf32>
      %82 = vector.multi_reduction <add>, %81, %cst_15 [0] : vector<2x8x1xf32> to vector<8x1xf32>
      %83 = arith.addf %79, %82 : vector<8x1xf32>
      %c0_16 = arith.constant 0 : index
      %c0_17 = arith.constant 0 : index
      %84 = vector.load %arg6[%c0_16, %c0_17] : memref<8x8xf32, #tpu.memory_space<vmem>>, vector<8x1xf32>
      tpu.vector_store %arg6[%c0_16, %c0_17], %83 {strides = array<i32>} : memref<8x8xf32, #tpu.memory_space<vmem>>, vector<8x1xf32>,
      %c0_18 = arith.constant 0 : index
      %c1 = arith.constant 1 : index
      %85 = vector.load %arg6[%c0_18, %c1] : memref<8x8xf32, #tpu.memory_space<vmem>>, vector<8x1xf32>
      %86 = arith.mulf %33, %33 : vector<2x8x1024xf32>
      %cst_19 = arith.constant dense<0.000000e+00> : vector<2x8xf32>
      %87 = vector.multi_reduction <add>, %86, %cst_19 [2] : vector<2x8x1024xf32> to vector<2x8xf32>
      %88 = vector.shape_cast %87 : vector<2x8xf32> to vector<2x8x1xf32>
      %cst_20 = arith.constant dense<0.000000e+00> : vector<8x1xf32>
      %89 = vector.multi_reduction <add>, %88, %cst_20 [0] : vector<2x8x1xf32> to vector<8x1xf32>
      %90 = arith.addf %85, %89 : vector<8x1xf32>
      %c0_21 = arith.constant 0 : index
      %c1_22 = arith.constant 1 : index
      %91 = vector.load %arg6[%c0_21, %c1_22] : memref<8x8xf32, #tpu.memory_space<vmem>>, vector<8x1xf32>
      tpu.vector_store %arg6[%c0_21, %c1_22], %90 {strides = array<i32>} : memref<8x8xf32, #tpu.memory_space<vmem>>, vector<8x1xf32>,
      %c0_23 = arith.constant 0 : index
      %c2 = arith.constant 2 : index
      %92 = vector.load %arg6[%c0_23, %c2] : memref<8x8xf32, #tpu.memory_space<vmem>>, vector<8x1xf32>
      %cst_24 = arith.constant dense<0.000000e+00> : vector<2x8xf32>
      %93 = vector.multi_reduction <add>, %64, %cst_24 [2] : vector<2x8x1024xf32> to vector<2x8xf32>
      %94 = vector.shape_cast %93 : vector<2x8xf32> to vector<2x8x1xf32>
      %cst_25 = arith.constant dense<0.000000e+00> : vector<8x1xf32>
      %95 = vector.multi_reduction <add>, %94, %cst_25 [0] : vector<2x8x1xf32> to vector<8x1xf32>
      %96 = arith.addf %92, %95 : vector<8x1xf32>
      %c0_26 = arith.constant 0 : index
      %c2_27 = arith.constant 2 : index
      %97 = vector.load %arg6[%c0_26, %c2_27] : memref<8x8xf32, #tpu.memory_space<vmem>>, vector<8x1xf32>
      tpu.vector_store %arg6[%c0_26, %c2_27], %96 {strides = array<i32>} : memref<8x8xf32, #tpu.memory_space<vmem>>, vector<8x1xf32>,
      %c0_28 = arith.constant 0 : index
      %c3 = arith.constant 3 : index
      %98 = vector.load %arg6[%c0_28, %c3] : memref<8x8xf32, #tpu.memory_space<vmem>>, vector<8x1xf32>
      %99 = arith.mulf %64, %64 : vector<2x8x1024xf32>
      %cst_29 = arith.constant dense<0.000000e+00> : vector<2x8xf32>
      %100 = vector.multi_reduction <add>, %99, %cst_29 [2] : vector<2x8x1024xf32> to vector<2x8xf32>
      %101 = vector.shape_cast %100 : vector<2x8xf32> to vector<2x8x1xf32>
      %cst_30 = arith.constant dense<0.000000e+00> : vector<8x1xf32>
      %102 = vector.multi_reduction <add>, %101, %cst_30 [0] : vector<2x8x1xf32> to vector<8x1xf32>
      %103 = arith.addf %98, %102 : vector<8x1xf32>
      %c0_31 = arith.constant 0 : index
      %c3_32 = arith.constant 3 : index
      %104 = vector.load %arg6[%c0_31, %c3_32] : memref<8x8xf32, #tpu.memory_space<vmem>>, vector<8x1xf32>
      tpu.vector_store %arg6[%c0_31, %c3_32], %103 {strides = array<i32>} : memref<8x8xf32, #tpu.memory_space<vmem>>, vector<8x1xf32>,
    } else {
    }
    %c1_i32 = arith.constant 1 : i32
    %73 = arith.cmpi eq, %arg0, %c1_i32 : i32
    %74 = arith.extui %73 : i1 to i32
    %c0_i32_11 = arith.constant 0 : i32
    %75 = arith.cmpi ne, %74, %c0_i32_11 : i32
    scf.if %75 {
      %c0_13 = arith.constant 0 : index
      %c0_14 = arith.constant 0 : index
      %79 = vector.load %arg6[%c0_13, %c0_14] : memref<8x8xf32, #tpu.memory_space<vmem>>, vector<8x8xf32>
      %80 = vector.extract_strided_slice %79 {offsets = [0, 0], sizes = [8, 1], strides = [1, 1]} : vector<8x8xf32> to vector<8x1xf32>
      %cst = arith.constant 4.8828125E-4 : f32
      %81 = vector.broadcast %cst : f32 to vector<8x1xf32>
      %82 = arith.mulf %80, %81 : vector<8x1xf32>
      %83 = vector.extract_strided_slice %79 {offsets = [0, 1], sizes = [8, 1], strides = [1, 1]} : vector<8x8xf32> to vector<8x1xf32>
      %cst_15 = arith.constant 4.8828125E-4 : f32
      %84 = vector.broadcast %cst_15 : f32 to vector<8x1xf32>
      %85 = arith.mulf %83, %84 : vector<8x1xf32>
      %86 = arith.mulf %82, %82 : vector<8x1xf32>
      %87 = arith.subf %85, %86 : vector<8x1xf32>
      %cst_16 = arith.constant 0.000000e+00 : f32
      %88 = vector.broadcast %cst_16 : f32 to vector<8x1xf32>
      %89 = arith.maximumf %87, %88 : vector<8x1xf32>
      %90 = vector.extract_strided_slice %79 {offsets = [0, 2], sizes = [8, 1], strides = [1, 1]} : vector<8x8xf32> to vector<8x1xf32>
      %cst_17 = arith.constant 4.8828125E-4 : f32
      %91 = vector.broadcast %cst_17 : f32 to vector<8x1xf32>
      %92 = arith.mulf %90, %91 : vector<8x1xf32>
      %93 = vector.extract_strided_slice %79 {offsets = [0, 3], sizes = [8, 1], strides = [1, 1]} : vector<8x8xf32> to vector<8x1xf32>
      %cst_18 = arith.constant 4.8828125E-4 : f32
      %94 = vector.broadcast %cst_18 : f32 to vector<8x1xf32>
      %95 = arith.mulf %93, %94 : vector<8x1xf32>
      %96 = arith.mulf %92, %92 : vector<8x1xf32>
      %97 = arith.subf %95, %96 : vector<8x1xf32>
      %cst_19 = arith.constant 0.000000e+00 : f32
      %98 = vector.broadcast %cst_19 : f32 to vector<8x1xf32>
      %99 = arith.maximumf %97, %98 : vector<8x1xf32>
      %100 = vector.shape_cast %82 : vector<8x1xf32> to vector<1x8x1xf32>
      %101 = vector.broadcast %100 : vector<1x8x1xf32> to vector<2x8x1024xf32>
      %102 = arith.subf %33, %101 : vector<2x8x1024xf32>
      %103 = vector.shape_cast %89 : vector<8x1xf32> to vector<1x8x1xf32>
      %cst_20 = arith.constant 9.99999974E-6 : f32
      %104 = vector.broadcast %cst_20 : f32 to vector<1x8x1xf32>
      %105 = arith.addf %103, %104 : vector<1x8x1xf32>
      %106 = math.rsqrt %105 : vector<1x8x1xf32>
      %107 = vector.broadcast %106 : vector<1x8x1xf32> to vector<2x8x1024xf32>
      %108 = arith.mulf %102, %107 : vector<2x8x1024xf32>
      %109 = vector.extract_strided_slice %0 {offsets = [0, 9], sizes = [8, 1], strides = [1, 1]} : vector<8x18xf32> to vector<8x1xf32>
      %110 = vector.shape_cast %109 : vector<8x1xf32> to vector<1x8x1xf32>
      %111 = vector.broadcast %110 : vector<1x8x1xf32> to vector<2x8x1024xf32>
      %112 = arith.mulf %108, %111 : vector<2x8x1024xf32>
      %113 = vector.extract_strided_slice %0 {offsets = [0, 10], sizes = [8, 1], strides = [1, 1]} : vector<8x18xf32> to vector<8x1xf32>
      %114 = vector.shape_cast %113 : vector<8x1xf32> to vector<1x8x1xf32>
      %115 = vector.broadcast %114 : vector<1x8x1xf32> to vector<2x8x1024xf32>
      %116 = arith.addf %112, %115 : vector<2x8x1024xf32>
      %117 = vector.shape_cast %92 : vector<8x1xf32> to vector<1x8x1xf32>
      %118 = vector.broadcast %117 : vector<1x8x1xf32> to vector<2x8x1024xf32>
      %119 = arith.subf %64, %118 : vector<2x8x1024xf32>
      %120 = vector.shape_cast %99 : vector<8x1xf32> to vector<1x8x1xf32>
      %cst_21 = arith.constant 9.99999974E-6 : f32
      %121 = vector.broadcast %cst_21 : f32 to vector<1x8x1xf32>
      %122 = arith.addf %120, %121 : vector<1x8x1xf32>
      %123 = math.rsqrt %122 : vector<1x8x1xf32>
      %124 = vector.broadcast %123 : vector<1x8x1xf32> to vector<2x8x1024xf32>
      %125 = arith.mulf %119, %124 : vector<2x8x1024xf32>
      %126 = vector.extract_strided_slice %0 {offsets = [0, 12], sizes = [8, 1], strides = [1, 1]} : vector<8x18xf32> to vector<8x1xf32>
      %127 = vector.shape_cast %126 : vector<8x1xf32> to vector<1x8x1xf32>
      %128 = vector.broadcast %127 : vector<1x8x1xf32> to vector<2x8x1024xf32>
      %129 = arith.mulf %125, %128 : vector<2x8x1024xf32>
      %130 = vector.extract_strided_slice %0 {offsets = [0, 13], sizes = [8, 1], strides = [1, 1]} : vector<8x18xf32> to vector<8x1xf32>
      %131 = vector.shape_cast %130 : vector<8x1xf32> to vector<1x8x1xf32>
      %132 = vector.broadcast %131 : vector<1x8x1xf32> to vector<2x8x1024xf32>
      %133 = arith.addf %129, %132 : vector<2x8x1024xf32>
      %134 = arith.addf %116, %133 : vector<2x8x1024xf32>
      %cst_22 = arith.constant 0.000000e+00 : f32
      %135 = vector.broadcast %cst_22 : f32 to vector<2x8x1024xf32>
      %136 = arith.maximumf %134, %135 : vector<2x8x1024xf32>
      %137 = vector.extract_strided_slice %0 {offsets = [0, 14], sizes = [8, 1], strides = [1, 1]} : vector<8x18xf32> to vector<8x1xf32>
      %138 = vector.shape_cast %137 : vector<8x1xf32> to vector<1x8x1xf32>
      %139 = vector.broadcast %138 : vector<1x8x1xf32> to vector<2x8x1024xf32>
      %140 = arith.mulf %139, %136 : vector<2x8x1024xf32>
      %cst_23 = arith.constant dense<0.000000e+00> : vector<2x1024xf32>
      %141 = vector.multi_reduction <add>, %140, %cst_23 [1] : vector<2x8x1024xf32> to vector<2x1024xf32>
      %142 = vector.shape_cast %141 : vector<2x1024xf32> to vector<2x1x1024xf32>
      %143 = vector.extract_strided_slice %0 {offsets = [0, 15], sizes = [1, 1], strides = [1, 1]} : vector<8x18xf32> to vector<1x1xf32>
      %144 = vector.shape_cast %143 : vector<1x1xf32> to vector<1x1x1xf32>
      %145 = vector.broadcast %144 : vector<1x1x1xf32> to vector<2x1x1024xf32>
      %146 = arith.addf %142, %145 : vector<2x1x1024xf32>
      %c0_24 = arith.constant 0 : index
      %c4 = arith.constant 4 : index
      %147 = vector.load %arg6[%c0_24, %c4] : memref<8x8xf32, #tpu.memory_space<vmem>>, vector<1x1xf32>
      %cst_25 = arith.constant dense<0.000000e+00> : vector<2x1xf32>
      %148 = vector.multi_reduction <add>, %146, %cst_25 [2] : vector<2x1x1024xf32> to vector<2x1xf32>
      %149 = vector.shape_cast %148 : vector<2x1xf32> to vector<2x1x1xf32>
      %cst_26 = arith.constant dense<0.000000e+00> : vector<1x1xf32>
      %150 = vector.multi_reduction <add>, %149, %cst_26 [0] : vector<2x1x1xf32> to vector<1x1xf32>
      %151 = arith.addf %147, %150 : vector<1x1xf32>
      %c0_27 = arith.constant 0 : index
      %c4_28 = arith.constant 4 : index
      %152 = vector.load %arg6[%c0_27, %c4_28] : memref<8x8xf32, #tpu.memory_space<vmem>>, vector<1x1xf32>
      tpu.vector_store %arg6[%c0_27, %c4_28], %151 {strides = array<i32>} : memref<8x8xf32, #tpu.memory_space<vmem>>, vector<1x1xf32>,
      %c0_29 = arith.constant 0 : index
      %c5 = arith.constant 5 : index
      %153 = vector.load %arg6[%c0_29, %c5] : memref<8x8xf32, #tpu.memory_space<vmem>>, vector<1x1xf32>
      %154 = arith.mulf %146, %146 : vector<2x1x1024xf32>
      %cst_30 = arith.constant dense<0.000000e+00> : vector<2x1xf32>
      %155 = vector.multi_reduction <add>, %154, %cst_30 [2] : vector<2x1x1024xf32> to vector<2x1xf32>
      %156 = vector.shape_cast %155 : vector<2x1xf32> to vector<2x1x1xf32>
      %cst_31 = arith.constant dense<0.000000e+00> : vector<1x1xf32>
      %157 = vector.multi_reduction <add>, %156, %cst_31 [0] : vector<2x1x1xf32> to vector<1x1xf32>
      %158 = arith.addf %153, %157 : vector<1x1xf32>
      %c0_32 = arith.constant 0 : index
      %c5_33 = arith.constant 5 : index
      %159 = vector.load %arg6[%c0_32, %c5_33] : memref<8x8xf32, #tpu.memory_space<vmem>>, vector<1x1xf32>
      tpu.vector_store %arg6[%c0_32, %c5_33], %158 {strides = array<i32>} : memref<8x8xf32, #tpu.memory_space<vmem>>, vector<1x1xf32>,
    } else {
    }
    %c2_i32 = arith.constant 2 : i32
    %76 = arith.cmpi eq, %arg0, %c2_i32 : i32
    %77 = arith.extui %76 : i1 to i32
    %c0_i32_12 = arith.constant 0 : i32
    %78 = arith.cmpi ne, %77, %c0_i32_12 : i32
    scf.if %78 {
      %c0_13 = arith.constant 0 : index
      %c0_14 = arith.constant 0 : index
      %79 = vector.load %arg6[%c0_13, %c0_14] : memref<8x8xf32, #tpu.memory_space<vmem>>, vector<8x8xf32>
      %80 = vector.extract_strided_slice %79 {offsets = [0, 0], sizes = [8, 1], strides = [1, 1]} : vector<8x8xf32> to vector<8x1xf32>
      %cst = arith.constant 4.8828125E-4 : f32
      %81 = vector.broadcast %cst : f32 to vector<8x1xf32>
      %82 = arith.mulf %80, %81 : vector<8x1xf32>
      %83 = vector.extract_strided_slice %79 {offsets = [0, 1], sizes = [8, 1], strides = [1, 1]} : vector<8x8xf32> to vector<8x1xf32>
      %cst_15 = arith.constant 4.8828125E-4 : f32
      %84 = vector.broadcast %cst_15 : f32 to vector<8x1xf32>
      %85 = arith.mulf %83, %84 : vector<8x1xf32>
      %86 = arith.mulf %82, %82 : vector<8x1xf32>
      %87 = arith.subf %85, %86 : vector<8x1xf32>
      %cst_16 = arith.constant 0.000000e+00 : f32
      %88 = vector.broadcast %cst_16 : f32 to vector<8x1xf32>
      %89 = arith.maximumf %87, %88 : vector<8x1xf32>
      %90 = vector.extract_strided_slice %79 {offsets = [0, 2], sizes = [8, 1], strides = [1, 1]} : vector<8x8xf32> to vector<8x1xf32>
      %cst_17 = arith.constant 4.8828125E-4 : f32
      %91 = vector.broadcast %cst_17 : f32 to vector<8x1xf32>
      %92 = arith.mulf %90, %91 : vector<8x1xf32>
      %93 = vector.extract_strided_slice %79 {offsets = [0, 3], sizes = [8, 1], strides = [1, 1]} : vector<8x8xf32> to vector<8x1xf32>
      %cst_18 = arith.constant 4.8828125E-4 : f32
      %94 = vector.broadcast %cst_18 : f32 to vector<8x1xf32>
      %95 = arith.mulf %93, %94 : vector<8x1xf32>
      %96 = arith.mulf %92, %92 : vector<8x1xf32>
      %97 = arith.subf %95, %96 : vector<8x1xf32>
      %cst_19 = arith.constant 0.000000e+00 : f32
      %98 = vector.broadcast %cst_19 : f32 to vector<8x1xf32>
      %99 = arith.maximumf %97, %98 : vector<8x1xf32>
      %100 = vector.shape_cast %82 : vector<8x1xf32> to vector<1x8x1xf32>
      %101 = vector.broadcast %100 : vector<1x8x1xf32> to vector<2x8x1024xf32>
      %102 = arith.subf %33, %101 : vector<2x8x1024xf32>
      %103 = vector.shape_cast %89 : vector<8x1xf32> to vector<1x8x1xf32>
      %cst_20 = arith.constant 9.99999974E-6 : f32
      %104 = vector.broadcast %cst_20 : f32 to vector<1x8x1xf32>
      %105 = arith.addf %103, %104 : vector<1x8x1xf32>
      %106 = math.rsqrt %105 : vector<1x8x1xf32>
      %107 = vector.broadcast %106 : vector<1x8x1xf32> to vector<2x8x1024xf32>
      %108 = arith.mulf %102, %107 : vector<2x8x1024xf32>
      %109 = vector.extract_strided_slice %0 {offsets = [0, 9], sizes = [8, 1], strides = [1, 1]} : vector<8x18xf32> to vector<8x1xf32>
      %110 = vector.shape_cast %109 : vector<8x1xf32> to vector<1x8x1xf32>
      %111 = vector.broadcast %110 : vector<1x8x1xf32> to vector<2x8x1024xf32>
      %112 = arith.mulf %108, %111 : vector<2x8x1024xf32>
      %113 = vector.extract_strided_slice %0 {offsets = [0, 10], sizes = [8, 1], strides = [1, 1]} : vector<8x18xf32> to vector<8x1xf32>
      %114 = vector.shape_cast %113 : vector<8x1xf32> to vector<1x8x1xf32>
      %115 = vector.broadcast %114 : vector<1x8x1xf32> to vector<2x8x1024xf32>
      %116 = arith.addf %112, %115 : vector<2x8x1024xf32>
      %117 = vector.shape_cast %92 : vector<8x1xf32> to vector<1x8x1xf32>
      %118 = vector.broadcast %117 : vector<1x8x1xf32> to vector<2x8x1024xf32>
      %119 = arith.subf %64, %118 : vector<2x8x1024xf32>
      %120 = vector.shape_cast %99 : vector<8x1xf32> to vector<1x8x1xf32>
      %cst_21 = arith.constant 9.99999974E-6 : f32
      %121 = vector.broadcast %cst_21 : f32 to vector<1x8x1xf32>
      %122 = arith.addf %120, %121 : vector<1x8x1xf32>
      %123 = math.rsqrt %122 : vector<1x8x1xf32>
      %124 = vector.broadcast %123 : vector<1x8x1xf32> to vector<2x8x1024xf32>
      %125 = arith.mulf %119, %124 : vector<2x8x1024xf32>
      %126 = vector.extract_strided_slice %0 {offsets = [0, 12], sizes = [8, 1], strides = [1, 1]} : vector<8x18xf32> to vector<8x1xf32>
      %127 = vector.shape_cast %126 : vector<8x1xf32> to vector<1x8x1xf32>
      %128 = vector.broadcast %127 : vector<1x8x1xf32> to vector<2x8x1024xf32>
      %129 = arith.mulf %125, %128 : vector<2x8x1024xf32>
      %130 = vector.extract_strided_slice %0 {offsets = [0, 13], sizes = [8, 1], strides = [1, 1]} : vector<8x18xf32> to vector<8x1xf32>
      %131 = vector.shape_cast %130 : vector<8x1xf32> to vector<1x8x1xf32>
      %132 = vector.broadcast %131 : vector<1x8x1xf32> to vector<2x8x1024xf32>
      %133 = arith.addf %129, %132 : vector<2x8x1024xf32>
      %134 = arith.addf %116, %133 : vector<2x8x1024xf32>
      %cst_22 = arith.constant 0.000000e+00 : f32
      %135 = vector.broadcast %cst_22 : f32 to vector<2x8x1024xf32>
      %136 = arith.maximumf %134, %135 : vector<2x8x1024xf32>
      %137 = vector.extract_strided_slice %0 {offsets = [0, 14], sizes = [8, 1], strides = [1, 1]} : vector<8x18xf32> to vector<8x1xf32>
      %138 = vector.shape_cast %137 : vector<8x1xf32> to vector<1x8x1xf32>
      %139 = vector.broadcast %138 : vector<1x8x1xf32> to vector<2x8x1024xf32>
      %140 = arith.mulf %139, %136 : vector<2x8x1024xf32>
      %cst_23 = arith.constant dense<0.000000e+00> : vector<2x1024xf32>
      %141 = vector.multi_reduction <add>, %140, %cst_23 [1] : vector<2x8x1024xf32> to vector<2x1024xf32>
      %142 = vector.shape_cast %141 : vector<2x1024xf32> to vector<2x1x1024xf32>
      %143 = vector.extract_strided_slice %0 {offsets = [0, 15], sizes = [1, 1], strides = [1, 1]} : vector<8x18xf32> to vector<1x1xf32>
      %144 = vector.shape_cast %143 : vector<1x1xf32> to vector<1x1x1xf32>
      %145 = vector.broadcast %144 : vector<1x1x1xf32> to vector<2x1x1024xf32>
      %146 = arith.addf %142, %145 : vector<2x1x1024xf32>
      %147 = vector.extract_strided_slice %79 {offsets = [0, 4], sizes = [1, 1], strides = [1, 1]} : vector<8x8xf32> to vector<1x1xf32>
      %cst_24 = arith.constant 4.8828125E-4 : f32
      %148 = vector.broadcast %cst_24 : f32 to vector<1x1xf32>
      %149 = arith.mulf %147, %148 : vector<1x1xf32>
      %150 = vector.extract_strided_slice %79 {offsets = [0, 5], sizes = [1, 1], strides = [1, 1]} : vector<8x8xf32> to vector<1x1xf32>
      %cst_25 = arith.constant 4.8828125E-4 : f32
      %151 = vector.broadcast %cst_25 : f32 to vector<1x1xf32>
      %152 = arith.mulf %150, %151 : vector<1x1xf32>
      %153 = arith.mulf %149, %149 : vector<1x1xf32>
      %154 = arith.subf %152, %153 : vector<1x1xf32>
      %cst_26 = arith.constant 0.000000e+00 : f32
      %155 = vector.broadcast %cst_26 : f32 to vector<1x1xf32>
      %156 = arith.maximumf %154, %155 : vector<1x1xf32>
      %157 = vector.shape_cast %149 : vector<1x1xf32> to vector<1x1x1xf32>
      %158 = vector.broadcast %157 : vector<1x1x1xf32> to vector<2x1x1024xf32>
      %159 = arith.subf %146, %158 : vector<2x1x1024xf32>
      %160 = vector.shape_cast %156 : vector<1x1xf32> to vector<1x1x1xf32>
      %cst_27 = arith.constant 9.99999974E-6 : f32
      %161 = vector.broadcast %cst_27 : f32 to vector<1x1x1xf32>
      %162 = arith.addf %160, %161 : vector<1x1x1xf32>
      %163 = math.rsqrt %162 : vector<1x1x1xf32>
      %164 = vector.broadcast %163 : vector<1x1x1xf32> to vector<2x1x1024xf32>
      %165 = arith.mulf %159, %164 : vector<2x1x1024xf32>
      %166 = vector.extract_strided_slice %0 {offsets = [0, 16], sizes = [1, 1], strides = [1, 1]} : vector<8x18xf32> to vector<1x1xf32>
      %167 = vector.shape_cast %166 : vector<1x1xf32> to vector<1x1x1xf32>
      %168 = vector.broadcast %167 : vector<1x1x1xf32> to vector<2x1x1024xf32>
      %169 = arith.mulf %165, %168 : vector<2x1x1024xf32>
      %170 = vector.extract_strided_slice %0 {offsets = [0, 17], sizes = [1, 1], strides = [1, 1]} : vector<8x18xf32> to vector<1x1xf32>
      %171 = vector.shape_cast %170 : vector<1x1xf32> to vector<1x1x1xf32>
      %172 = vector.broadcast %171 : vector<1x1x1xf32> to vector<2x1x1024xf32>
      %173 = arith.addf %169, %172 : vector<2x1x1024xf32>
      %cst_28 = arith.constant 0.000000e+00 : f32
      %174 = vector.broadcast %cst_28 : f32 to vector<2x1x1024xf32>
      %175 = arith.subf %174, %173 : vector<2x1x1024xf32>
      %176 = math.exp %175 : vector<2x1x1024xf32>
      %cst_29 = arith.constant 1.000000e+00 : f32
      %177 = vector.broadcast %cst_29 : f32 to vector<2x1x1024xf32>
      %178 = arith.addf %177, %176 : vector<2x1x1024xf32>
      %179 = tpu.reciprocal %178 : vector<2x1x1024xf32> -> vector<2x1x1024xf32>
      %c0_30 = arith.constant 0 : index
      %c0_31 = arith.constant 0 : index
      %c0_32 = arith.constant 0 : index
      %c0_33 = arith.constant 0 : index
      %180 = vector.load %arg5[%c0_30, %c0_31, %c0_32, %c0_33] : memref<1x2x1x1024xf32, #tpu.memory_space<vmem>>, vector<1x2x1x1024xf32>
      %181 = vector.shape_cast %180 : vector<1x2x1x1024xf32> to vector<2x1x1024xf32>
      %182 = vector.shape_cast %179 : vector<2x1x1024xf32> to vector<1x2x1x1024xf32>
      tpu.vector_store %arg5[%c0_30, %c0_31, %c0_32, %c0_33], %182 {strides = array<i32>} : memref<1x2x1x1024xf32, #tpu.memory_space<vmem>>, vector<1x2x1x1024xf32>,
    } else {
    }
    return
  }
  func.func @transform_0(%arg0: i32, %arg1: i32) -> (i32, i32) {
    %c0_i32 = arith.constant 0 : i32
    %c0_i32_0 = arith.constant 0 : i32
    %c0_i32_1 = arith.constant 0 : i32
    return %c0_i32, %c0_i32_0 : i32, i32
  }
  func.func @transform_1(%arg0: i32, %arg1: i32) -> (i32, i32, i32) {
    %c0_i32 = arith.constant 0 : i32
    %c0_i32_0 = arith.constant 0 : i32
    %c0_i32_1 = arith.constant 0 : i32
    return %c0_i32, %c0_i32_0, %arg1 : i32, i32, i32
  }
  func.func @transform_2(%arg0: i32, %arg1: i32) -> (i32, i32, i32) {
    %c0_i32 = arith.constant 0 : i32
    %c0_i32_0 = arith.constant 0 : i32
    %c0_i32_1 = arith.constant 0 : i32
    return %c0_i32, %c0_i32_0, %arg1 : i32, i32, i32
  }
  func.func @transform_3(%arg0: i32, %arg1: i32) -> (i32, i32, i32, i32) {
    %c0_i32 = arith.constant 0 : i32
    %c0_i32_0 = arith.constant 0 : i32
    %c0_i32_1 = arith.constant 0 : i32
    return %arg0, %c0_i32, %c0_i32_0, %arg1 : i32, i32, i32, i32
  }
}

</mosaic_0001>

<llo_original>
// kernel: tpu_custom_call.1
$region0: #{tpu_custom_call.1}
  #allocation0 [shape = 'u32[]', space=smem, size = 0x4, offset = 0x4, fixed_abs, tag = 'smem constant byte address 0x4 - core index']
  #allocation1 [shape = 'u32[72,128]{1,0:T(1,128)}', space=vmem, size = 0x9000, scoped, tag = 'internal scratch']
  #allocation2 [shape = 'f32[8,8]{1,0:T(8,128)}', space=vmem, size = 0x1000, scoped, tag = 'scratch operand']
  %s0 = inlined_call_operand.hbm [shape: f32[8,18], index: 0, kind: input, shape index: {}]
  %s1 = inlined_call_operand.hbm [shape: f32[2,4,1024], index: 1, kind: input, shape index: {}]
  %s2 = inlined_call_operand.hbm [shape: f32[2,4,1024], index: 2, kind: input, shape index: {}]
  %s3 = inlined_call_operand.hbm [shape: f32[3,2,1,1024], index: 3, kind: output, shape index: {}]
  %s4 = sld [smem:[#allocation0]]
  $region73: #{tpu_custom_call.1} parent=0
    _
  %s6 = ssub.s32 1, %s4
  %s7 = scalar_select 0, %s6, %s4
  $region1: #{tpu_custom_call.1} parent=0
    #allocation3 [shape = 'u8[4096]{0}', space=vmem, size = 0x1000, scoped, tag = 'input window, operand 0, single buffered']
    #allocation4 [shape = 's32[2]{0}', space=sflag, size = 0x8, scoped, tag = 'scoped memory for tpu_custom_call.1']
    #allocation5 [shape = 's32[2]{0}', space=sflag, size = 0x8, scoped, tag = 'scoped memory for tpu_custom_call.1']
    #allocation6 [shape = 'u8[32768]{0}', space=vmem, size = 0x8000, scoped, tag = 'input window, operand 1, single buffered']
    #allocation7 [shape = 's32[1]{0}', space=sflag, size = 0x4, scoped, tag = 'scoped memory for tpu_custom_call.1']
    #allocation8 [shape = 'u8[32768]{0}', space=vmem, size = 0x8000, scoped, tag = 'input window, operand 2, single buffered']
    #allocation9 [shape = 'u8[16384]{0}', space=vmem, size = 0x4000, scoped, tag = 'output window, operand 0']
    %8 = vsyncpa [#allocation4], 0
    %9 = vsyncpa [#allocation7], 0
    %10 = vsyncpa [#allocation5], 0
    %s11 = scalar_lea.sflag [#allocation5], 1
    %12 = vsyncpa %s11, 0
    loop: start=0, step=1, limit=5
    $region2: #{tpu_custom_call.1} parent=1 // loop_pre_header
      _
    $region3: #{tpu_custom_call.1} parent=1 // loop_header
      %s14 = sphi 0, %s18
      %p15 = scmp.ge.s32.totalorder %s14, 5
      %s21 = sphi 0, %s33
      %s22 = sphi 0, %s29
      %s23 = sphi 0, %s21
      %s24 = sphi 0, %s22
      %s25 = sphi 0, %s23
      %s26 = sphi 0, %s24
      %s34 = sphi 0, %s34
      %s36 = sphi 0, %s34
      %s37 = sphi 0, %s36
      %s51 = sphi 0, %s37
      %s57 = sphi 0, %s59
      %s60 = sphi 0, %s57
      %s61 = sphi 0, %s60
      %s77 = sphi 0, %s61
      %s83 = sphi 0, %s85
      %s86 = sphi 0, %s83
      %s87 = sphi 0, %s86
      %s103 = sphi 0, %s87
      %s111 = sphi 0, %s113
      %s114 = sphi 0, %s111
      %s115 = sphi 0, %s114
      %s131 = sphi 0, %s115
    $region4: #{tpu_custom_call.1} parent=1 // loop_header_branch
      %17 = sbr.rel (%p15) target = $region8
    $region5: #{tpu_custom_call.1} parent=1 // loop_body
      %s19 = ssub.s32 %s14, 1
      %s20 = ssub.s32 %s14, 2
      %s27 = sadd.s32 1, %s22
      %p28 = scmp.ge.s32.totalorder %s27, 1
      %s29 = scalar_select %p28, 0, %s27
      %s30 = sadd.s32 1, %s21
      %s31 = scalar_select %p28, %s30, %s21
      %p32 = scmp.ge.s32.totalorder %s31, 3
      %s33 = scalar_select %p32, 0, %s31
      %s35 = sadd.s32 %s34, 1
      %p38 = scmp.eq.s32.totalorder %s14, 2
      %p39 = scmp.ne.s32.totalorder %s34, %s36
      %p40 = scmp.eq.s32.totalorder %s14, 0
      %p41 = por %p39, %p40
      %p42 = scmp.ne.s32.totalorder %s34, %s36
      %p43 = scmp.eq.s32.totalorder %s19, 2
      %p44 = por %p42, %p43
      %p45 = scmp.ne.s32.totalorder %s36, %s37
      %p46 = scmp.eq.s32.totalorder %s19, 0
      %p47 = por %p45, %p46
      %p48 = scmp.ne.s32.totalorder %s36, %s37
      %p49 = scmp.eq.s32.totalorder %s20, 2
      %p50 = por %p48, %p49
      %p52 = scmp.ne.s32.totalorder %s37, %s51
      %p53 = scmp.eq.s32.totalorder %s20, 0
      %p54 = por %p52, %p53
      %s55 = ssub.s32 %s22, %s29
      %p56 = scmp.eq.s32.totalorder %s55, 0
      %s58 = sadd.s32 %s57, 1
      %s59 = scalar_select %p56, %s57, %s58
      %p62 = pneg %p56
      %p63 = scmp.eq.s32.totalorder %s14, 2
      %p64 = por %p62, %p63
      %p65 = scmp.ne.s32.totalorder %s57, %s60
      %p66 = scmp.eq.s32.totalorder %s14, 0
      %p67 = por %p65, %p66
      %p68 = scmp.ne.s32.totalorder %s57, %s60
      %p69 = scmp.eq.s32.totalorder %s19, 2
      %p70 = por %p68, %p69
      %p71 = scmp.ne.s32.totalorder %s60, %s61
      %p72 = scmp.eq.s32.totalorder %s19, 0
      %p73 = por %p71, %p72
      %p74 = scmp.ne.s32.totalorder %s60, %s61
      %p75 = scmp.eq.s32.totalorder %s20, 2
      %p76 = por %p74, %p75
      %p78 = scmp.ne.s32.totalorder %s61, %s77
      %p79 = scmp.eq.s32.totalorder %s20, 0
      %p80 = por %p78, %p79
      %s81 = ssub.s32 %s22, %s29
      %p82 = scmp.eq.s32.totalorder %s81, 0
      %s84 = sadd.s32 %s83, 1
      %s85 = scalar_select %p82, %s83, %s84
      %p88 = pneg %p82
      %p89 = scmp.eq.s32.totalorder %s14, 2
      %p90 = por %p88, %p89
      %p91 = scmp.ne.s32.totalorder %s83, %s86
      %p92 = scmp.eq.s32.totalorder %s14, 0
      %p93 = por %p91, %p92
      %p94 = scmp.ne.s32.totalorder %s83, %s86
      %p95 = scmp.eq.s32.totalorder %s19, 2
      %p96 = por %p94, %p95
      %p97 = scmp.ne.s32.totalorder %s86, %s87
      %p98 = scmp.eq.s32.totalorder %s19, 0
      %p99 = por %p97, %p98
      %p100 = scmp.ne.s32.totalorder %s86, %s87
      %p101 = scmp.eq.s32.totalorder %s20, 2
      %p102 = por %p100, %p101
      %p104 = scmp.ne.s32.totalorder %s87, %s103
      %p105 = scmp.eq.s32.totalorder %s20, 0
      %p106 = por %p104, %p105
      %s107 = ssub.s32 %s21, %s33
      %s108 = ssub.s32 %s22, %s29
      %s109 = sor.u32 %s107, %s108
      %p110 = scmp.eq.s32.totalorder %s109, 0
      %s112 = sadd.s32 %s111, 1
      %s113 = scalar_select %p110, %s111, %s112
      %p116 = pneg %p110
      %p117 = scmp.eq.s32.totalorder %s14, 2
      %p118 = por %p116, %p117
      %p119 = scmp.ne.s32.totalorder %s111, %s114
      %p120 = scmp.eq.s32.totalorder %s14, 0
      %p121 = por %p119, %p120
      %p122 = scmp.ne.s32.totalorder %s111, %s114
      %p123 = scmp.eq.s32.totalorder %s19, 2
      %p124 = por %p122, %p123
      %p125 = scmp.ne.s32.totalorder %s114, %s115
      %p126 = scmp.eq.s32.totalorder %s19, 0
      %p127 = por %p125, %p126
      %p128 = scmp.ne.s32.totalorder %s114, %s115
      %p129 = scmp.eq.s32.totalorder %s20, 2
      %p130 = por %p128, %p129
      %p132 = scmp.ne.s32.totalorder %s115, %s131
      %p133 = scmp.eq.s32.totalorder %s20, 0
      %p134 = por %p132, %p133
      %p135 = scmp.le.s32.totalorder 1, %s14
      %p136 = scmp.lt.s32.totalorder %s14, 4
      %p137 = pnand %p135, %p136
      %p138 = pneg %p137
      // Predicated region
      $region9: #{tpu_custom_call.1} parent=5 // pred_check
        _
      $region10: #{tpu_custom_call.1} parent=5 // pred_check_branch
        %140 = sbr.rel (%p137) target = $region12
      $region11: #{tpu_custom_call.1} parent=5 // pred_region
        %s141 = ssub.s32 %s14, 1
        // Predicated region
        $region13: #{tpu_custom_call.1} parent=11 // pred_check
          %p142 = pneg %p47
        $region14: #{tpu_custom_call.1} parent=11 // pred_check_branch
          %144 = sbr.rel (%p142) target = $region16
        $region15: #{tpu_custom_call.1} parent=11 // pred_region
          %146 = vsyncadd [#allocation4], 0
          %s148 = sshll.u32 %s0, 4
          %s149 = int_to_ptr.hbm [resolvable:$true] %s148
          %s150 = sshll.u32 [#allocation3], 4
          %s151 = int_to_ptr.vmem [resolvable:$true] %s150
          %153 = dma.hbm_to_vmem [thread:$0]  %s149, 128, %s151, [#allocation4]
        $region16: #{tpu_custom_call.1} parent=11 // pred_fallthru
          _
        // Predicated region
        $region17: #{tpu_custom_call.1} parent=11 // pred_check
          %p154 = pneg %p73
        $region18: #{tpu_custom_call.1} parent=11 // pred_check_branch
          %156 = sbr.rel (%p154) target = $region20
        $region19: #{tpu_custom_call.1} parent=11 // pred_region
          %s157 = smul.u32 8, %s24
          %159 = vsyncadd [#allocation7], 0
          %s160 = smul.addr %s157, 4
          %s161 = scalar_lea.hbm %s1, %s160
          %s162 = sshll.u32 %s161, 4
          %s163 = int_to_ptr.hbm [resolvable:$true] %s162
          %s164 = sshll.u32 [#allocation6], 4
          %s165 = int_to_ptr.vmem [resolvable:$true] %s164
          %170 = dma.hbm_to_vmem [thread:$0]  %s163, 1024, %s165, [#allocation7], 512, 512, 32
        $region20: #{tpu_custom_call.1} parent=11 // pred_fallthru
          _
        // Predicated region
        $region21: #{tpu_custom_call.1} parent=11 // pred_check
          %p171 = pneg %p99
        $region22: #{tpu_custom_call.1} parent=11 // pred_check_branch
          %173 = sbr.rel (%p171) target = $region24
        $region23: #{tpu_custom_call.1} parent=11 // pred_region
          %s174 = smul.u32 8, %s24
          %176 = vsyncadd [#allocation7], 0
          %s177 = smul.addr %s174, 4
          %s178 = scalar_lea.hbm %s2, %s177
          %s179 = sshll.u32 %s178, 4
          %s180 = int_to_ptr.hbm [resolvable:$true] %s179
          %s181 = sshll.u32 [#allocation8], 4
          %s182 = int_to_ptr.vmem [resolvable:$true] %s181
          %187 = dma.hbm_to_vmem [thread:$0]  %s180, 1024, %s182, [#allocation7], 512, 512, 32
        $region24: #{tpu_custom_call.1} parent=11 // pred_fallthru
          _
      $region12: #{tpu_custom_call.1} parent=5 // pred_fallthru
        _
      %p188 = scmp.lt.s32.totalorder %s14, 3
      // Predicated region
      $region25: #{tpu_custom_call.1} parent=5 // pred_check
        %p189 = pneg %p188
      $region26: #{tpu_custom_call.1} parent=5 // pred_check_branch
        %191 = sbr.rel (%p189) target = $region28
      $region27: #{tpu_custom_call.1} parent=5 // pred_region
        _
      $region28: #{tpu_custom_call.1} parent=5 // pred_fallthru
        _
      %p192 = scmp.le.s32.totalorder 1, %s14
      %p193 = scmp.lt.s32.totalorder %s14, 4
      %p194 = pnand %p192, %p193
      %p195 = pneg %p194
      // Predicated region
      $region29: #{tpu_custom_call.1} parent=5 // pred_check
        _
      $region30: #{tpu_custom_call.1} parent=5 // pred_check_branch
        %197 = sbr.rel (%p194) target = $region32
      $region31: #{tpu_custom_call.1} parent=5 // pred_region
        %s198 = ssub.s32 %s14, 1
        // Predicated region
        $region33: #{tpu_custom_call.1} parent=31 // pred_check
          %p199 = pneg %p47
        $region34: #{tpu_custom_call.1} parent=31 // pred_check_branch
          %201 = sbr.rel (%p199) target = $region36
        $region35: #{tpu_custom_call.1} parent=31 // pred_region
          %203 = dma.done [#allocation4], 128
        $region36: #{tpu_custom_call.1} parent=31 // pred_fallthru
          _
        // Predicated region
        $region37: #{tpu_custom_call.1} parent=31 // pred_check
          %p204 = pneg %p73
        $region38: #{tpu_custom_call.1} parent=31 // pred_check_branch
          %206 = sbr.rel (%p204) target = $region40
        $region39: #{tpu_custom_call.1} parent=31 // pred_region
          %208 = dma.done [#allocation7], 1024
        $region40: #{tpu_custom_call.1} parent=31 // pred_fallthru
          _
        // Predicated region
        $region41: #{tpu_custom_call.1} parent=31 // pred_check
          %p209 = pneg %p99
        $region42: #{tpu_custom_call.1} parent=31 // pred_check_branch
          %211 = sbr.rel (%p209) target = $region44
        $region43: #{tpu_custom_call.1} parent=31 // pred_region
          %213 = dma.done [#allocation7], 1024
        $region44: #{tpu_custom_call.1} parent=31 // pred_fallthru
          _
        %p214 = pneg %p47
        %p215 = pneg %p44
        %p216 = pneg %p73
        %p217 = pneg %p70
        %p218 = pneg %p99
        %p219 = pneg %p96
        %p220 = pneg %p127
        %p221 = pneg %p124
        %s222 = sand.u32 %s114, 1
        %s223 = scalar_lea.sflag [#allocation5], %s222
        %s224 = sand.u32 %s114, 1
        %s225 = smul.addr %s224, 16
        %s226 = scalar_lea.vmem [#allocation9], %s225
        %s227 = smul.u32 8, %s24
        %s228 = smul.u32 8, %s24
        %s229 = smul.u32 8, %s24
        %v230 = vld [vmem:[#allocation3] sm:$0xff]
        %v231 = vld [vmem:[#allocation6] sm:$0xff]
        %v232 = vld [vmem:[#allocation6 + $0x8] sm:$0xff]
        %v233 = vld [vmem:[#allocation6 + $0x10] sm:$0xff]
        %v234 = vld [vmem:[#allocation6 + $0x18] sm:$0xff]
        %v235 = vld [vmem:[#allocation6 + $0x20] sm:$0xff]
        %v236 = vld [vmem:[#allocation6 + $0x28] sm:$0xff]
        %v237 = vld [vmem:[#allocation6 + $0x30] sm:$0xff]
        %v238 = vld [vmem:[#allocation6 + $0x38] sm:$0xff]
        %v239 = vld [vmem:[#allocation8] sm:$0xff]
        %v240 = vld [vmem:[#allocation8 + $0x8] sm:$0xff]
        %v241 = vld [vmem:[#allocation8 + $0x10] sm:$0xff]
        %v242 = vld [vmem:[#allocation8 + $0x18] sm:$0xff]
        %v243 = vld [vmem:[#allocation8 + $0x20] sm:$0xff]
        %v244 = vld [vmem:[#allocation8 + $0x28] sm:$0xff]
        %v245 = vld [vmem:[#allocation8 + $0x30] sm:$0xff]
        %v246 = vld [vmem:[#allocation8 + $0x38] sm:$0xff]
        %248 = vset.pattern.permute.xlu0 0
        %249 = vperm.xlu0 %248, %v230
        %v250 = vpop.permute.xlu0 %249
        %v260 = vperm.slane %v231, 0
        %v261 = vperm.slane %v231, 4
        %v262 = vperm.slane %v232, 0
        %v263 = vperm.slane %v232, 4
        %v264 = vperm.slane %v233, 0
        %v265 = vperm.slane %v233, 4
        %v266 = vperm.slane %v234, 0
        %v267 = vperm.slane %v234, 4
        %v268 = vperm.slane %v235, 0
        %v269 = vperm.slane %v235, 4
        %v270 = vperm.slane %v236, 0
        %v271 = vperm.slane %v236, 4
        %v272 = vperm.slane %v237, 0
        %v273 = vperm.slane %v237, 4
        %v274 = vperm.slane %v238, 0
        %v275 = vperm.slane %v238, 4
        %v292 = vperm.slane %v260, 0
        %v293 = vperm.slane %v261, 0
        %v294 = vperm.slane %v262, 0
        %v295 = vperm.slane %v263, 0
        %v296 = vperm.slane %v264, 0
        %v297 = vperm.slane %v265, 0
        %v298 = vperm.slane %v266, 0
        %v299 = vperm.slane %v267, 0
        %v300 = vperm.slane %v268, 0
        %v301 = vperm.slane %v269, 0
        %v302 = vperm.slane %v270, 0
        %v303 = vperm.slane %v271, 0
        %v304 = vperm.slane %v272, 0
        %v305 = vperm.slane %v273, 0
        %v306 = vperm.slane %v274, 0
        %v307 = vperm.slane %v275, 0
        %v308 = vmul.f32 %v250, %v292
        %v309 = vmul.f32 %v250, %v293
        %v310 = vmul.f32 %v250, %v294
        %v311 = vmul.f32 %v250, %v295
        %v312 = vmul.f32 %v250, %v296
        %v313 = vmul.f32 %v250, %v297
        %v314 = vmul.f32 %v250, %v298
        %v315 = vmul.f32 %v250, %v299
        %v316 = vmul.f32 %v250, %v300
        %v317 = vmul.f32 %v250, %v301
        %v318 = vmul.f32 %v250, %v302
        %v319 = vmul.f32 %v250, %v303
        %v320 = vmul.f32 %v250, %v304
        %v321 = vmul.f32 %v250, %v305
        %v322 = vmul.f32 %v250, %v306
        %v323 = vmul.f32 %v250, %v307
        %324 = vset.pattern.permute.xlu0 1
        %325 = vperm.xlu0 %324, %v230
        %v326 = vpop.permute.xlu0 %325
        %v328 = vperm.slane %v231, 1
        %v329 = vperm.slane %v231, 5
        %v330 = vperm.slane %v232, 1
        %v331 = vperm.slane %v232, 5
        %v332 = vperm.slane %v233, 1
        %v333 = vperm.slane %v233, 5
        %v334 = vperm.slane %v234, 1
        %v335 = vperm.slane %v234, 5
        %v336 = vperm.slane %v235, 1
        %v337 = vperm.slane %v235, 5
        %v338 = vperm.slane %v236, 1
        %v339 = vperm.slane %v236, 5
        %v340 = vperm.slane %v237, 1
        %v341 = vperm.slane %v237, 5
        %v342 = vperm.slane %v238, 1
        %v343 = vperm.slane %v238, 5
        %v360 = vperm.slane %v328, 1
        %v361 = vperm.slane %v329, 1
        %v362 = vperm.slane %v330, 1
        %v363 = vperm.slane %v331, 1
        %v364 = vperm.slane %v332, 1
        %v365 = vperm.slane %v333, 1
        %v366 = vperm.slane %v334, 1
        %v367 = vperm.slane %v335, 1
        %v368 = vperm.slane %v336, 1
        %v369 = vperm.slane %v337, 1
        %v370 = vperm.slane %v338, 1
        %v371 = vperm.slane %v339, 1
        %v372 = vperm.slane %v340, 1
        %v373 = vperm.slane %v341, 1
        %v374 = vperm.slane %v342, 1
        %v375 = vperm.slane %v343, 1
        %v376 = vmul.f32 %v326, %v360
        %v377 = vmul.f32 %v326, %v361
        %v378 = vmul.f32 %v326, %v362
        %v379 = vmul.f32 %v326, %v363
        %v380 = vmul.f32 %v326, %v364
        %v381 = vmul.f32 %v326, %v365
        %v382 = vmul.f32 %v326, %v366
        %v383 = vmul.f32 %v326, %v367
        %v384 = vmul.f32 %v326, %v368
        %v385 = vmul.f32 %v326, %v369
        %v386 = vmul.f32 %v326, %v370
        %v387 = vmul.f32 %v326, %v371
        %v388 = vmul.f32 %v326, %v372
        %v389 = vmul.f32 %v326, %v373
        %v390 = vmul.f32 %v326, %v374
        %v391 = vmul.f32 %v326, %v375
        %v392 = vadd.f32 %v308, %v376
        %v393 = vadd.f32 %v309, %v377
        %v394 = vadd.f32 %v310, %v378
        %v395 = vadd.f32 %v311, %v379
        %v396 = vadd.f32 %v312, %v380
        %v397 = vadd.f32 %v313, %v381
        %v398 = vadd.f32 %v314, %v382
        %v399 = vadd.f32 %v315, %v383
        %v400 = vadd.f32 %v316, %v384
        %v401 = vadd.f32 %v317, %v385
        %v402 = vadd.f32 %v318, %v386
        %v403 = vadd.f32 %v319, %v387
        %v404 = vadd.f32 %v320, %v388
        %v405 = vadd.f32 %v321, %v389
        %v406 = vadd.f32 %v322, %v390
        %v407 = vadd.f32 %v323, %v391
        %408 = vset.pattern.permute.xlu0 2
        %409 = vperm.xlu0 %408, %v230
        %v410 = vpop.permute.xlu0 %409
        %v412 = vperm.slane %v231, 2
        %v413 = vperm.slane %v231, 6
        %v414 = vperm.slane %v232, 2
        %v415 = vperm.slane %v232, 6
        %v416 = vperm.slane %v233, 2
        %v417 = vperm.slane %v233, 6
        %v418 = vperm.slane %v234, 2
        %v419 = vperm.slane %v234, 6
        %v420 = vperm.slane %v235, 2
        %v421 = vperm.slane %v235, 6
        %v422 = vperm.slane %v236, 2
        %v423 = vperm.slane %v236, 6
        %v424 = vperm.slane %v237, 2
        %v425 = vperm.slane %v237, 6
        %v426 = vperm.slane %v238, 2
        %v427 = vperm.slane %v238, 6
        %v444 = vperm.slane %v412, 2
        %v445 = vperm.slane %v413, 2
        %v446 = vperm.slane %v414, 2
        %v447 = vperm.slane %v415, 2
        %v448 = vperm.slane %v416, 2
        %v449 = vperm.slane %v417, 2
        %v450 = vperm.slane %v418, 2
        %v451 = vperm.slane %v419, 2
        %v452 = vperm.slane %v420, 2
        %v453 = vperm.slane %v421, 2
        %v454 = vperm.slane %v422, 2
        %v455 = vperm.slane %v423, 2
        %v456 = vperm.slane %v424, 2
        %v457 = vperm.slane %v425, 2
        %v458 = vperm.slane %v426, 2
        %v459 = vperm.slane %v427, 2
        %v460 = vmul.f32 %v410, %v444
        %v461 = vmul.f32 %v410, %v445
        %v462 = vmul.f32 %v410, %v446
        %v463 = vmul.f32 %v410, %v447
        %v464 = vmul.f32 %v410, %v448
        %v465 = vmul.f32 %v410, %v449
        %v466 = vmul.f32 %v410, %v450
        %v467 = vmul.f32 %v410, %v451
        %v468 = vmul.f32 %v410, %v452
        %v469 = vmul.f32 %v410, %v453
        %v470 = vmul.f32 %v410, %v454
        %v471 = vmul.f32 %v410, %v455
        %v472 = vmul.f32 %v410, %v456
        %v473 = vmul.f32 %v410, %v457
        %v474 = vmul.f32 %v410, %v458
        %v475 = vmul.f32 %v410, %v459
        %v476 = vadd.f32 %v392, %v460
        %v477 = vadd.f32 %v393, %v461
        %v478 = vadd.f32 %v394, %v462
        %v479 = vadd.f32 %v395, %v463
        %v480 = vadd.f32 %v396, %v464
        %v481 = vadd.f32 %v397, %v465
        %v482 = vadd.f32 %v398, %v466
        %v483 = vadd.f32 %v399, %v467
        %v484 = vadd.f32 %v400, %v468
        %v485 = vadd.f32 %v401, %v469
        %v486 = vadd.f32 %v402, %v470
        %v487 = vadd.f32 %v403, %v471
        %v488 = vadd.f32 %v404, %v472
        %v489 = vadd.f32 %v405, %v473
        %v490 = vadd.f32 %v406, %v474
        %v491 = vadd.f32 %v407, %v475
        %492 = vset.pattern.permute.xlu0 3
        %493 = vperm.xlu0 %492, %v230
        %v494 = vpop.permute.xlu0 %493
        %v496 = vperm.slane %v231, 3
        %v497 = vperm.slane %v231, 7
        %v498 = vperm.slane %v232, 3
        %v499 = vperm.slane %v232, 7
        %v500 = vperm.slane %v233, 3
        %v501 = vperm.slane %v233, 7
        %v502 = vperm.slane %v234, 3
        %v503 = vperm.slane %v234, 7
        %v504 = vperm.slane %v235, 3
        %v505 = vperm.slane %v235, 7
        %v506 = vperm.slane %v236, 3
        %v507 = vperm.slane %v236, 7
        %v508 = vperm.slane %v237, 3
        %v509 = vperm.slane %v237, 7
        %v510 = vperm.slane %v238, 3
        %v511 = vperm.slane %v238, 7
        %v528 = vperm.slane %v496, 3
        %v529 = vperm.slane %v497, 3
        %v530 = vperm.slane %v498, 3
        %v531 = vperm.slane %v499, 3
        %v532 = vperm.slane %v500, 3
        %v533 = vperm.slane %v501, 3
        %v534 = vperm.slane %v502, 3
        %v535 = vperm.slane %v503, 3
        %v536 = vperm.slane %v504, 3
        %v537 = vperm.slane %v505, 3
        %v538 = vperm.slane %v506, 3
        %v539 = vperm.slane %v507, 3
        %v540 = vperm.slane %v508, 3
        %v541 = vperm.slane %v509, 3
        %v542 = vperm.slane %v510, 3
        %v543 = vperm.slane %v511, 3
        %v544 = vmul.f32 %v494, %v528
        %v545 = vmul.f32 %v494, %v529
        %v546 = vmul.f32 %v494, %v530
        %v547 = vmul.f32 %v494, %v531
        %v548 = vmul.f32 %v494, %v532
        %v549 = vmul.f32 %v494, %v533
        %v550 = vmul.f32 %v494, %v534
        %v551 = vmul.f32 %v494, %v535
        %v552 = vmul.f32 %v494, %v536
        %v553 = vmul.f32 %v494, %v537
        %v554 = vmul.f32 %v494, %v538
        %v555 = vmul.f32 %v494, %v539
        %v556 = vmul.f32 %v494, %v540
        %v557 = vmul.f32 %v494, %v541
        %v558 = vmul.f32 %v494, %v542
        %v559 = vmul.f32 %v494, %v543
        %v560 = vadd.f32 %v476, %v544
        %v561 = vadd.f32 %v477, %v545
        %v562 = vadd.f32 %v478, %v546
        %v563 = vadd.f32 %v479, %v547
        %v564 = vadd.f32 %v480, %v548
        %v565 = vadd.f32 %v481, %v549
        %v566 = vadd.f32 %v482, %v550
        %v567 = vadd.f32 %v483, %v551
        %v568 = vadd.f32 %v484, %v552
        %v569 = vadd.f32 %v485, %v553
        %v570 = vadd.f32 %v486, %v554
        %v571 = vadd.f32 %v487, %v555
        %v572 = vadd.f32 %v488, %v556
        %v573 = vadd.f32 %v489, %v557
        %v574 = vadd.f32 %v490, %v558
        %v575 = vadd.f32 %v491, %v559
        %576 = vset.pattern.permute.xlu0 8
        %577 = vperm.xlu0 %576, %v230
        %v578 = vpop.permute.xlu0 %577
        %v580 = vadd.f32 %v560, %v578
        %v581 = vadd.f32 %v561, %v578
        %v582 = vadd.f32 %v562, %v578
        %v583 = vadd.f32 %v563, %v578
        %v584 = vadd.f32 %v564, %v578
        %v585 = vadd.f32 %v565, %v578
        %v586 = vadd.f32 %v566, %v578
        %v587 = vadd.f32 %v567, %v578
        %v588 = vadd.f32 %v568, %v578
        %v589 = vadd.f32 %v569, %v578
        %v590 = vadd.f32 %v570, %v578
        %v591 = vadd.f32 %v571, %v578
        %v592 = vadd.f32 %v572, %v578
        %v593 = vadd.f32 %v573, %v578
        %v594 = vadd.f32 %v574, %v578
        %v595 = vadd.f32 %v575, %v578
        %596 = vset.pattern.permute.xlu0 4
        %597 = vperm.xlu0 %596, %v230
        %v598 = vpop.permute.xlu0 %597
        %v608 = vperm.slane %v239, 0
        %v609 = vperm.slane %v239, 4
        %v610 = vperm.slane %v240, 0
        %v611 = vperm.slane %v240, 4
        %v612 = vperm.slane %v241, 0
        %v613 = vperm.slane %v241, 4
        %v614 = vperm.slane %v242, 0
        %v615 = vperm.slane %v242, 4
        %v616 = vperm.slane %v243, 0
        %v617 = vperm.slane %v243, 4
        %v618 = vperm.slane %v244, 0
        %v619 = vperm.slane %v244, 4
        %v620 = vperm.slane %v245, 0
        %v621 = vperm.slane %v245, 4
        %v622 = vperm.slane %v246, 0
        %v623 = vperm.slane %v246, 4
        %v640 = vperm.slane %v608, 0
        %v641 = vperm.slane %v609, 0
        %v642 = vperm.slane %v610, 0
        %v643 = vperm.slane %v611, 0
        %v644 = vperm.slane %v612, 0
        %v645 = vperm.slane %v613, 0
        %v646 = vperm.slane %v614, 0
        %v647 = vperm.slane %v615, 0
        %v648 = vperm.slane %v616, 0
        %v649 = vperm.slane %v617, 0
        %v650 = vperm.slane %v618, 0
        %v651 = vperm.slane %v619, 0
        %v652 = vperm.slane %v620, 0
        %v653 = vperm.slane %v621, 0
        %v654 = vperm.slane %v622, 0
        %v655 = vperm.slane %v623, 0
        %v656 = vmul.f32 %v598, %v640
        %v657 = vmul.f32 %v598, %v641
        %v658 = vmul.f32 %v598, %v642
        %v659 = vmul.f32 %v598, %v643
        %v660 = vmul.f32 %v598, %v644
        %v661 = vmul.f32 %v598, %v645
        %v662 = vmul.f32 %v598, %v646
        %v663 = vmul.f32 %v598, %v647
        %v664 = vmul.f32 %v598, %v648
        %v665 = vmul.f32 %v598, %v649
        %v666 = vmul.f32 %v598, %v650
        %v667 = vmul.f32 %v598, %v651
        %v668 = vmul.f32 %v598, %v652
        %v669 = vmul.f32 %v598, %v653
        %v670 = vmul.f32 %v598, %v654
        %v671 = vmul.f32 %v598, %v655
        %672 = vset.pattern.permute.xlu0 5
        %673 = vperm.xlu0 %672, %v230
        %v674 = vpop.permute.xlu0 %673
        %v676 = vperm.slane %v239, 1
        %v677 = vperm.slane %v239, 5
        %v678 = vperm.slane %v240, 1
        %v679 = vperm.slane %v240, 5
        %v680 = vperm.slane %v241, 1
        %v681 = vperm.slane %v241, 5
        %v682 = vperm.slane %v242, 1
        %v683 = vperm.slane %v242, 5
        %v684 = vperm.slane %v243, 1
        %v685 = vperm.slane %v243, 5
        %v686 = vperm.slane %v244, 1
        %v687 = vperm.slane %v244, 5
        %v688 = vperm.slane %v245, 1
        %v689 = vperm.slane %v245, 5
        %v690 = vperm.slane %v246, 1
        %v691 = vperm.slane %v246, 5
        %v708 = vperm.slane %v676, 1
        %v709 = vperm.slane %v677, 1
        %v710 = vperm.slane %v678, 1
        %v711 = vperm.slane %v679, 1
        %v712 = vperm.slane %v680, 1
        %v713 = vperm.slane %v681, 1
        %v714 = vperm.slane %v682, 1
        %v715 = vperm.slane %v683, 1
        %v716 = vperm.slane %v684, 1
        %v717 = vperm.slane %v685, 1
        %v718 = vperm.slane %v686, 1
        %v719 = vperm.slane %v687, 1
        %v720 = vperm.slane %v688, 1
        %v721 = vperm.slane %v689, 1
        %v722 = vperm.slane %v690, 1
        %v723 = vperm.slane %v691, 1
        %v724 = vmul.f32 %v674, %v708
        %v725 = vmul.f32 %v674, %v709
        %v726 = vmul.f32 %v674, %v710
        %v727 = vmul.f32 %v674, %v711
        %v728 = vmul.f32 %v674, %v712
        %v729 = vmul.f32 %v674, %v713
        %v730 = vmul.f32 %v674, %v714
        %v731 = vmul.f32 %v674, %v715
        %v732 = vmul.f32 %v674, %v716
        %v733 = vmul.f32 %v674, %v717
        %v734 = vmul.f32 %v674, %v718
        %v735 = vmul.f32 %v674, %v719
        %v736 = vmul.f32 %v674, %v720
        %v737 = vmul.f32 %v674, %v721
        %v738 = vmul.f32 %v674, %v722
        %v739 = vmul.f32 %v674, %v723
        %v740 = vadd.f32 %v656, %v724
        %v741 = vadd.f32 %v657, %v725
        %v742 = vadd.f32 %v658, %v726
        %v743 = vadd.f32 %v659, %v727
        %v744 = vadd.f32 %v660, %v728
        %v745 = vadd.f32 %v661, %v729
        %v746 = vadd.f32 %v662, %v730
        %v747 = vadd.f32 %v663, %v731
        %v748 = vadd.f32 %v664, %v732
        %v749 = vadd.f32 %v665, %v733
        %v750 = vadd.f32 %v666, %v734
        %v751 = vadd.f32 %v667, %v735
        %v752 = vadd.f32 %v668, %v736
        %v753 = vadd.f32 %v669, %v737
        %v754 = vadd.f32 %v670, %v738
        %v755 = vadd.f32 %v671, %v739
        %756 = vset.pattern.permute.xlu0 6
        %757 = vperm.xlu0 %756, %v230
        %v758 = vpop.permute.xlu0 %757
        %v760 = vperm.slane %v239, 2
        %v761 = vperm.slane %v239, 6
        %v762 = vperm.slane %v240, 2
        %v763 = vperm.slane %v240, 6
        %v764 = vperm.slane %v241, 2
        %v765 = vperm.slane %v241, 6
        %v766 = vperm.slane %v242, 2
        %v767 = vperm.slane %v242, 6
        %v768 = vperm.slane %v243, 2
        %v769 = vperm.slane %v243, 6
        %v770 = vperm.slane %v244, 2
        %v771 = vperm.slane %v244, 6
        %v772 = vperm.slane %v245, 2
        %v773 = vperm.slane %v245, 6
        %v774 = vperm.slane %v246, 2
        %v775 = vperm.slane %v246, 6
        %v792 = vperm.slane %v760, 2
        %v793 = vperm.slane %v761, 2
        %v794 = vperm.slane %v762, 2
        %v795 = vperm.slane %v763, 2
        %v796 = vperm.slane %v764, 2
        %v797 = vperm.slane %v765, 2
        %v798 = vperm.slane %v766, 2
        %v799 = vperm.slane %v767, 2
        %v800 = vperm.slane %v768, 2
        %v801 = vperm.slane %v769, 2
        %v802 = vperm.slane %v770, 2
        %v803 = vperm.slane %v771, 2
        %v804 = vperm.slane %v772, 2
        %v805 = vperm.slane %v773, 2
        %v806 = vperm.slane %v774, 2
        %v807 = vperm.slane %v775, 2
        %v808 = vmul.f32 %v758, %v792
        %v809 = vmul.f32 %v758, %v793
        %v810 = vmul.f32 %v758, %v794
        %v811 = vmul.f32 %v758, %v795
        %v812 = vmul.f32 %v758, %v796
        %v813 = vmul.f32 %v758, %v797
        %v814 = vmul.f32 %v758, %v798
        %v815 = vmul.f32 %v758, %v799
        %v816 = vmul.f32 %v758, %v800
        %v817 = vmul.f32 %v758, %v801
        %v818 = vmul.f32 %v758, %v802
        %v819 = vmul.f32 %v758, %v803
        %v820 = vmul.f32 %v758, %v804
        %v821 = vmul.f32 %v758, %v805
        %v822 = vmul.f32 %v758, %v806
        %v823 = vmul.f32 %v758, %v807
        %v824 = vadd.f32 %v740, %v808
        %v825 = vadd.f32 %v741, %v809
        %v826 = vadd.f32 %v742, %v810
        %v827 = vadd.f32 %v743, %v811
        %v828 = vadd.f32 %v744, %v812
        %v829 = vadd.f32 %v745, %v813
        %v830 = vadd.f32 %v746, %v814
        %v831 = vadd.f32 %v747, %v815
        %v832 = vadd.f32 %v748, %v816
        %v833 = vadd.f32 %v749, %v817
        %v834 = vadd.f32 %v750, %v818
        %v835 = vadd.f32 %v751, %v819
        %v836 = vadd.f32 %v752, %v820
        %v837 = vadd.f32 %v753, %v821
        %v838 = vadd.f32 %v754, %v822
        %v839 = vadd.f32 %v755, %v823
        %840 = vset.pattern.permute.xlu0 7
        %841 = vperm.xlu0 %840, %v230
        %v842 = vpop.permute.xlu0 %841
        %v844 = vperm.slane %v239, 3
        %v845 = vperm.slane %v239, 7
        %v846 = vperm.slane %v240, 3
        %v847 = vperm.slane %v240, 7
        %v848 = vperm.slane %v241, 3
        %v849 = vperm.slane %v241, 7
        %v850 = vperm.slane %v242, 3
        %v851 = vperm.slane %v242, 7
        %v852 = vperm.slane %v243, 3
        %v853 = vperm.slane %v243, 7
        %v854 = vperm.slane %v244, 3
        %v855 = vperm.slane %v244, 7
        %v856 = vperm.slane %v245, 3
        %v857 = vperm.slane %v245, 7
        %v858 = vperm.slane %v246, 3
        %v859 = vperm.slane %v246, 7
        %v876 = vperm.slane %v844, 3
        %v877 = vperm.slane %v845, 3
        %v878 = vperm.slane %v846, 3
        %v879 = vperm.slane %v847, 3
        %v880 = vperm.slane %v848, 3
        %v881 = vperm.slane %v849, 3
        %v882 = vperm.slane %v850, 3
        %v883 = vperm.slane %v851, 3
        %v884 = vperm.slane %v852, 3
        %v885 = vperm.slane %v853, 3
        %v886 = vperm.slane %v854, 3
        %v887 = vperm.slane %v855, 3
        %v888 = vperm.slane %v856, 3
        %v889 = vperm.slane %v857, 3
        %v890 = vperm.slane %v858, 3
        %v891 = vperm.slane %v859, 3
        %v892 = vmul.f32 %v842, %v876
        %v893 = vmul.f32 %v842, %v877
        %v894 = vmul.f32 %v842, %v878
        %v895 = vmul.f32 %v842, %v879
        %v896 = vmul.f32 %v842, %v880
        %v897 = vmul.f32 %v842, %v881
        %v898 = vmul.f32 %v842, %v882
        %v899 = vmul.f32 %v842, %v883
        %v900 = vmul.f32 %v842, %v884
        %v901 = vmul.f32 %v842, %v885
        %v902 = vmul.f32 %v842, %v886
        %v903 = vmul.f32 %v842, %v887
        %v904 = vmul.f32 %v842, %v888
        %v905 = vmul.f32 %v842, %v889
        %v906 = vmul.f32 %v842, %v890
        %v907 = vmul.f32 %v842, %v891
        %v908 = vadd.f32 %v824, %v892
        %v909 = vadd.f32 %v825, %v893
        %v910 = vadd.f32 %v826, %v894
        %v911 = vadd.f32 %v827, %v895
        %v912 = vadd.f32 %v828, %v896
        %v913 = vadd.f32 %v829, %v897
        %v914 = vadd.f32 %v830, %v898
        %v915 = vadd.f32 %v831, %v899
        %v916 = vadd.f32 %v832, %v900
        %v917 = vadd.f32 %v833, %v901
        %v918 = vadd.f32 %v834, %v902
        %v919 = vadd.f32 %v835, %v903
        %v920 = vadd.f32 %v836, %v904
        %v921 = vadd.f32 %v837, %v905
        %v922 = vadd.f32 %v838, %v906
        %v923 = vadd.f32 %v839, %v907
        %924 = vset.pattern.permute.xlu0 11
        %925 = vperm.xlu0 %924, %v230
        %v926 = vpop.permute.xlu0 %925
        %v928 = vadd.f32 %v908, %v926
        %v929 = vadd.f32 %v909, %v926
        %v930 = vadd.f32 %v910, %v926
        %v931 = vadd.f32 %v911, %v926
        %v932 = vadd.f32 %v912, %v926
        %v933 = vadd.f32 %v913, %v926
        %v934 = vadd.f32 %v914, %v926
        %v935 = vadd.f32 %v915, %v926
        %v936 = vadd.f32 %v916, %v926
        %v937 = vadd.f32 %v917, %v926
        %v938 = vadd.f32 %v918, %v926
        %v939 = vadd.f32 %v919, %v926
        %v940 = vadd.f32 %v920, %v926
        %v941 = vadd.f32 %v921, %v926
        %v942 = vadd.f32 %v922, %v926
        %v943 = vadd.f32 %v923, %v926
        %p944 = scmp.eq.s32.totalorder %s23, 0
        %p945 = scmp.eq.s32.totalorder %s24, 0
        %p946 = pnand %p944, %p945
        %p947 = pneg %p946
        // Predicated region
        $region45: #{tpu_custom_call.1} parent=31 // pred_check
          _
        $region46: #{tpu_custom_call.1} parent=31 // pred_check_branch
          %949 = sbr.rel (%p946) target = $region48
        $region47: #{tpu_custom_call.1} parent=31 // pred_region
          %vm950 = vcmask 64512
          %951 = vst.msk [vmem:[#allocation2] sm:$0xff] %vm950, 0.0
        $region48: #{tpu_custom_call.1} parent=31 // pred_fallthru
          _
        // Predicated region
        $region49: #{tpu_custom_call.1} parent=31 // pred_check
          %p952 = pneg %p944
        $region50: #{tpu_custom_call.1} parent=31 // pred_check_branch
          %954 = sbr.rel (%p952) target = $region52
        $region51: #{tpu_custom_call.1} parent=31 // pred_region
          %v955 = vld [vmem:[#allocation2] sm:$0xff]
          %v956 = vadd.f32 %v580, %v581
          %v957 = vadd.f32 %v956, %v582
          %v958 = vadd.f32 %v957, %v583
          %v959 = vadd.f32 %v958, %v584
          %v960 = vadd.f32 %v959, %v585
          %v961 = vadd.f32 %v960, %v586
          %v962 = vadd.f32 %v961, %v587
          %963 = vadd.xlane.f32.xlu0 %v962
          %v964 = vpop.xlane.xlu0 %963
          %v965 = vadd.f32 %v588, %v589
          %v966 = vadd.f32 %v965, %v590
          %v967 = vadd.f32 %v966, %v591
          %v968 = vadd.f32 %v967, %v592
          %v969 = vadd.f32 %v968, %v593
          %v970 = vadd.f32 %v969, %v594
          %v971 = vadd.f32 %v970, %v595
          %972 = vadd.xlane.f32.xlu0 %v971
          %v973 = vpop.xlane.xlu0 %972
          %v974 = vadd.f32 %v964, %v973
          %v975 = vadd.f32 %v955, %v974
          %vm976 = vcmask 7168
          %977 = vst.msk [vmem:[#allocation2] sm:$0xff] %vm976, %v975
          %v978 = vld [vmem:[#allocation2] sm:$0xff]
          %v979 = vmul.f32 %v580, %v580
          %v980 = vmul.f32 %v581, %v581
          %v981 = vmul.f32 %v582, %v582
          %v982 = vmul.f32 %v583, %v583
          %v983 = vmul.f32 %v584, %v584
          %v984 = vmul.f32 %v585, %v585
          %v985 = vmul.f32 %v586, %v586
          %v986 = vmul.f32 %v587, %v587
          %v987 = vmul.f32 %v588, %v588
          %v988 = vmul.f32 %v589, %v589
          %v989 = vmul.f32 %v590, %v590
          %v990 = vmul.f32 %v591, %v591
          %v991 = vmul.f32 %v592, %v592
          %v992 = vmul.f32 %v593, %v593
          %v993 = vmul.f32 %v594, %v594
          %v994 = vmul.f32 %v595, %v595
          %v995 = vadd.f32 %v979, %v980
          %v996 = vadd.f32 %v995, %v981
          %v997 = vadd.f32 %v996, %v982
          %v998 = vadd.f32 %v997, %v983
          %v999 = vadd.f32 %v998, %v984
          %v1000 = vadd.f32 %v999, %v985
          %v1001 = vadd.f32 %v1000, %v986
          %1002 = vadd.xlane.f32.xlu0 %v1001
          %v1003 = vpop.xlane.xlu0 %1002
          %v1004 = vadd.f32 %v987, %v988
          %v1005 = vadd.f32 %v1004, %v989
          %v1006 = vadd.f32 %v1005, %v990
          %v1007 = vadd.f32 %v1006, %v991
          %v1008 = vadd.f32 %v1007, %v992
          %v1009 = vadd.f32 %v1008, %v993
          %v1010 = vadd.f32 %v1009, %v994
          %1011 = vadd.xlane.f32.xlu0 %v1010
          %v1012 = vpop.xlane.xlu0 %1011
          %v1013 = vadd.f32 %v1003, %v1012
          %v1014 = vadd.f32 %v978, %v1013
          %vm1015 = vcmask 15368
          %1016 = vst.msk [vmem:[#allocation2] sm:$0xff] %vm1015, %v1014
          %v1017 = vld [vmem:[#allocation2] sm:$0xff]
          %v1018 = vadd.f32 %v928, %v929
          %v1019 = vadd.f32 %v1018, %v930
          %v1020 = vadd.f32 %v1019, %v931
          %v1021 = vadd.f32 %v1020, %v932
          %v1022 = vadd.f32 %v1021, %v933
          %v1023 = vadd.f32 %v1022, %v934
          %v1024 = vadd.f32 %v1023, %v935
          %1025 = vadd.xlane.f32.xlu0 %v1024
          %v1026 = vpop.xlane.xlu0 %1025
          %v1027 = vadd.f32 %v936, %v937
          %v1028 = vadd.f32 %v1027, %v938
          %v1029 = vadd.f32 %v1028, %v939
          %v1030 = vadd.f32 %v1029, %v940
          %v1031 = vadd.f32 %v1030, %v941
          %v1032 = vadd.f32 %v1031, %v942
          %v1033 = vadd.f32 %v1032, %v943
          %1034 = vadd.xlane.f32.xlu0 %v1033
          %v1035 = vpop.xlane.xlu0 %1034
          %v1036 = vadd.f32 %v1026, %v1035
          %v1037 = vadd.f32 %v1017, %v1036
          %vm1038 = vcmask 23568
          %1039 = vst.msk [vmem:[#allocation2] sm:$0xff] %vm1038, %v1037
          %v1040 = vld [vmem:[#allocation2] sm:$0xff]
          %v1041 = vmul.f32 %v928, %v928
          %v1042 = vmul.f32 %v929, %v929
          %v1043 = vmul.f32 %v930, %v930
          %v1044 = vmul.f32 %v931, %v931
          %v1045 = vmul.f32 %v932, %v932
          %v1046 = vmul.f32 %v933, %v933
          %v1047 = vmul.f32 %v934, %v934
          %v1048 = vmul.f32 %v935, %v935
          %v1049 = vmul.f32 %v936, %v936
          %v1050 = vmul.f32 %v937, %v937
          %v1051 = vmul.f32 %v938, %v938
          %v1052 = vmul.f32 %v939, %v939
          %v1053 = vmul.f32 %v940, %v940
          %v1054 = vmul.f32 %v941, %v941
          %v1055 = vmul.f32 %v942, %v942
          %v1056 = vmul.f32 %v943, %v943
          %v1057 = vadd.f32 %v1041, %v1042
          %v1058 = vadd.f32 %v1057, %v1043
          %v1059 = vadd.f32 %v1058, %v1044
          %v1060 = vadd.f32 %v1059, %v1045
          %v1061 = vadd.f32 %v1060, %v1046
          %v1062 = vadd.f32 %v1061, %v1047
          %v1063 = vadd.f32 %v1062, %v1048
          %1064 = vadd.xlane.f32.xlu0 %v1063
          %v1065 = vpop.xlane.xlu0 %1064
          %v1066 = vadd.f32 %v1049, %v1050
          %v1067 = vadd.f32 %v1066, %v1051
          %v1068 = vadd.f32 %v1067, %v1052
          %v1069 = vadd.f32 %v1068, %v1053
          %v1070 = vadd.f32 %v1069, %v1054
          %v1071 = vadd.f32 %v1070, %v1055
          %v1072 = vadd.f32 %v1071, %v1056
          %1073 = vadd.xlane.f32.xlu0 %v1072
          %v1074 = vpop.xlane.xlu0 %1073
          %v1075 = vadd.f32 %v1065, %v1074
          %v1076 = vadd.f32 %v1040, %v1075
          %vm1077 = vcmask 31768
          %1078 = vst.msk [vmem:[#allocation2] sm:$0xff] %vm1077, %v1076
        $region52: #{tpu_custom_call.1} parent=31 // pred_fallthru
          _
        %p1079 = scmp.eq.s32.totalorder %s23, 1
        // Predicated region
        $region53: #{tpu_custom_call.1} parent=31 // pred_check
          %p1080 = pneg %p1079
        $region54: #{tpu_custom_call.1} parent=31 // pred_check_branch
          %1082 = sbr.rel (%p1080) target = $region56
        $region55: #{tpu_custom_call.1} parent=31 // pred_region
          %v1083 = vld [vmem:[#allocation2] sm:$0xff]
          %v1084 = vmul.f32 %v1083, 0.00048828125
          %v1085 = vmul.f32 %v1084, %v1084
          %1087 = vrot.lane.b32.xlu0 %v1085, 1
          %v1088 = vpop.permute.xlu0 %1087
          %v1090 = vsub.f32 %v1084, %v1088
          %v1091 = vmax.f32 %v1090, 0.0
          %1093 = vset.pattern.permute.xlu0 0
          %1094 = vperm.xlu0 %1093, %v1084
          %v1095 = vpop.permute.xlu0 %1094
          %v1097 = vsub.f32 %v580, %v1095
          %v1098 = vsub.f32 %v581, %v1095
          %v1099 = vsub.f32 %v582, %v1095
          %v1100 = vsub.f32 %v583, %v1095
          %v1101 = vsub.f32 %v584, %v1095
          %v1102 = vsub.f32 %v585, %v1095
          %v1103 = vsub.f32 %v586, %v1095
          %v1104 = vsub.f32 %v587, %v1095
          %v1105 = vsub.f32 %v588, %v1095
          %v1106 = vsub.f32 %v589, %v1095
          %v1107 = vsub.f32 %v590, %v1095
          %v1108 = vsub.f32 %v591, %v1095
          %v1109 = vsub.f32 %v592, %v1095
          %v1110 = vsub.f32 %v593, %v1095
          %v1111 = vsub.f32 %v594, %v1095
          %v1112 = vsub.f32 %v595, %v1095
          %v1113 = vadd.f32 %v1091, 1e-05
          %v1114 = vrsqrt.pop %v1113
          %v1115 = vmul.f32 %v1114, %v1113
          %v1116 = vmul.f32 %v1115, %v1114
          %v1117 = vmul.f32 0.5, %v1116
          %v1118 = vsub.f32 1.5, %v1117
          %v1119 = vmul.f32 %v1114, %v1118
          %vm1120 = vweird.f32 %v1113
          %vm1121 = vweird.f32 %v1114
          %vm1122 = vmor %vm1120, %vm1121
          %v1123 = vsel %vm1122, %v1114, %v1119
          %1125 = vset.pattern.permute.xlu0 1
          %1126 = vperm.xlu0 %1125, %v1123
          %v1127 = vpop.permute.xlu0 %1126
          %v1129 = vmul.f32 %v1097, %v1127
          %v1130 = vmul.f32 %v1098, %v1127
          %v1131 = vmul.f32 %v1099, %v1127
          %v1132 = vmul.f32 %v1100, %v1127
          %v1133 = vmul.f32 %v1101, %v1127
          %v1134 = vmul.f32 %v1102, %v1127
          %v1135 = vmul.f32 %v1103, %v1127
          %v1136 = vmul.f32 %v1104, %v1127
          %v1137 = vmul.f32 %v1105, %v1127
          %v1138 = vmul.f32 %v1106, %v1127
          %v1139 = vmul.f32 %v1107, %v1127
          %v1140 = vmul.f32 %v1108, %v1127
          %v1141 = vmul.f32 %v1109, %v1127
          %v1142 = vmul.f32 %v1110, %v1127
          %v1143 = vmul.f32 %v1111, %v1127
          %v1144 = vmul.f32 %v1112, %v1127
          %1145 = vset.pattern.permute.xlu0 9
          %1146 = vperm.xlu0 %1145, %v230
          %v1147 = vpop.permute.xlu0 %1146
          %v1149 = vmul.f32 %v1129, %v1147
          %v1150 = vmul.f32 %v1130, %v1147
          %v1151 = vmul.f32 %v1131, %v1147
          %v1152 = vmul.f32 %v1132, %v1147
          %v1153 = vmul.f32 %v1133, %v1147
          %v1154 = vmul.f32 %v1134, %v1147
          %v1155 = vmul.f32 %v1135, %v1147
          %v1156 = vmul.f32 %v1136, %v1147
          %v1157 = vmul.f32 %v1137, %v1147
          %v1158 = vmul.f32 %v1138, %v1147
          %v1159 = vmul.f32 %v1139, %v1147
          %v1160 = vmul.f32 %v1140, %v1147
          %v1161 = vmul.f32 %v1141, %v1147
          %v1162 = vmul.f32 %v1142, %v1147
          %v1163 = vmul.f32 %v1143, %v1147
          %v1164 = vmul.f32 %v1144, %v1147
          %1165 = vset.pattern.permute.xlu0 10
          %1166 = vperm.xlu0 %1165, %v230
          %v1167 = vpop.permute.xlu0 %1166
          %v1169 = vadd.f32 %v1149, %v1167
          %v1170 = vadd.f32 %v1150, %v1167
          %v1171 = vadd.f32 %v1151, %v1167
          %v1172 = vadd.f32 %v1152, %v1167
          %v1173 = vadd.f32 %v1153, %v1167
          %v1174 = vadd.f32 %v1154, %v1167
          %v1175 = vadd.f32 %v1155, %v1167
          %v1176 = vadd.f32 %v1156, %v1167
          %v1177 = vadd.f32 %v1157, %v1167
          %v1178 = vadd.f32 %v1158, %v1167
          %v1179 = vadd.f32 %v1159, %v1167
          %v1180 = vadd.f32 %v1160, %v1167
          %v1181 = vadd.f32 %v1161, %v1167
          %v1182 = vadd.f32 %v1162, %v1167
          %v1183 = vadd.f32 %v1163, %v1167
          %v1184 = vadd.f32 %v1164, %v1167
          %1185 = vset.pattern.permute.xlu0 2
          %1186 = vperm.xlu0 %1185, %v1084
          %v1187 = vpop.permute.xlu0 %1186
          %v1189 = vsub.f32 %v928, %v1187
          %v1190 = vsub.f32 %v929, %v1187
          %v1191 = vsub.f32 %v930, %v1187
          %v1192 = vsub.f32 %v931, %v1187
          %v1193 = vsub.f32 %v932, %v1187
          %v1194 = vsub.f32 %v933, %v1187
          %v1195 = vsub.f32 %v934, %v1187
          %v1196 = vsub.f32 %v935, %v1187
          %v1197 = vsub.f32 %v936, %v1187
          %v1198 = vsub.f32 %v937, %v1187
          %v1199 = vsub.f32 %v938, %v1187
          %v1200 = vsub.f32 %v939, %v1187
          %v1201 = vsub.f32 %v940, %v1187
          %v1202 = vsub.f32 %v941, %v1187
          %v1203 = vsub.f32 %v942, %v1187
          %v1204 = vsub.f32 %v943, %v1187
          %1205 = vset.pattern.permute.xlu0 3
          %1206 = vperm.xlu0 %1205, %v1123
          %v1207 = vpop.permute.xlu0 %1206
          %v1209 = vmul.f32 %v1189, %v1207
          %v1210 = vmul.f32 %v1190, %v1207
          %v1211 = vmul.f32 %v1191, %v1207
          %v1212 = vmul.f32 %v1192, %v1207
          %v1213 = vmul.f32 %v1193, %v1207
          %v1214 = vmul.f32 %v1194, %v1207
          %v1215 = vmul.f32 %v1195, %v1207
          %v1216 = vmul.f32 %v1196, %v1207
          %v1217 = vmul.f32 %v1197, %v1207
          %v1218 = vmul.f32 %v1198, %v1207
          %v1219 = vmul.f32 %v1199, %v1207
          %v1220 = vmul.f32 %v1200, %v1207
          %v1221 = vmul.f32 %v1201, %v1207
          %v1222 = vmul.f32 %v1202, %v1207
          %v1223 = vmul.f32 %v1203, %v1207
          %v1224 = vmul.f32 %v1204, %v1207
          %1225 = vset.pattern.permute.xlu0 12
          %1226 = vperm.xlu0 %1225, %v230
          %v1227 = vpop.permute.xlu0 %1226
          %v1229 = vmul.f32 %v1209, %v1227
          %v1230 = vmul.f32 %v1210, %v1227
          %v1231 = vmul.f32 %v1211, %v1227
          %v1232 = vmul.f32 %v1212, %v1227
          %v1233 = vmul.f32 %v1213, %v1227
          %v1234 = vmul.f32 %v1214, %v1227
          %v1235 = vmul.f32 %v1215, %v1227
          %v1236 = vmul.f32 %v1216, %v1227
          %v1237 = vmul.f32 %v1217, %v1227
          %v1238 = vmul.f32 %v1218, %v1227
          %v1239 = vmul.f32 %v1219, %v1227
          %v1240 = vmul.f32 %v1220, %v1227
          %v1241 = vmul.f32 %v1221, %v1227
          %v1242 = vmul.f32 %v1222, %v1227
          %v1243 = vmul.f32 %v1223, %v1227
          %v1244 = vmul.f32 %v1224, %v1227
          %1245 = vset.pattern.permute.xlu0 13
          %1246 = vperm.xlu0 %1245, %v230
          %v1247 = vpop.permute.xlu0 %1246
          %v1249 = vadd.f32 %v1229, %v1247
          %v1250 = vadd.f32 %v1230, %v1247
          %v1251 = vadd.f32 %v1231, %v1247
          %v1252 = vadd.f32 %v1232, %v1247
          %v1253 = vadd.f32 %v1233, %v1247
          %v1254 = vadd.f32 %v1234, %v1247
          %v1255 = vadd.f32 %v1235, %v1247
          %v1256 = vadd.f32 %v1236, %v1247
          %v1257 = vadd.f32 %v1237, %v1247
          %v1258 = vadd.f32 %v1238, %v1247
          %v1259 = vadd.f32 %v1239, %v1247
          %v1260 = vadd.f32 %v1240, %v1247
          %v1261 = vadd.f32 %v1241, %v1247
          %v1262 = vadd.f32 %v1242, %v1247
          %v1263 = vadd.f32 %v1243, %v1247
          %v1264 = vadd.f32 %v1244, %v1247
          %v1265 = vadd.f32 %v1169, %v1249
          %v1266 = vadd.f32 %v1170, %v1250
          %v1267 = vadd.f32 %v1171, %v1251
          %v1268 = vadd.f32 %v1172, %v1252
          %v1269 = vadd.f32 %v1173, %v1253
          %v1270 = vadd.f32 %v1174, %v1254
          %v1271 = vadd.f32 %v1175, %v1255
          %v1272 = vadd.f32 %v1176, %v1256
          %v1273 = vadd.f32 %v1177, %v1257
          %v1274 = vadd.f32 %v1178, %v1258
          %v1275 = vadd.f32 %v1179, %v1259
          %v1276 = vadd.f32 %v1180, %v1260
          %v1277 = vadd.f32 %v1181, %v1261
          %v1278 = vadd.f32 %v1182, %v1262
          %v1279 = vadd.f32 %v1183, %v1263
          %v1280 = vadd.f32 %v1184, %v1264
          %v1281 = vmax.f32 %v1265, 0.0
          %v1282 = vmax.f32 %v1266, 0.0
          %v1283 = vmax.f32 %v1267, 0.0
          %v1284 = vmax.f32 %v1268, 0.0
          %v1285 = vmax.f32 %v1269, 0.0
          %v1286 = vmax.f32 %v1270, 0.0
          %v1287 = vmax.f32 %v1271, 0.0
          %v1288 = vmax.f32 %v1272, 0.0
          %v1289 = vmax.f32 %v1273, 0.0
          %v1290 = vmax.f32 %v1274, 0.0
          %v1291 = vmax.f32 %v1275, 0.0
          %v1292 = vmax.f32 %v1276, 0.0
          %v1293 = vmax.f32 %v1277, 0.0
          %v1294 = vmax.f32 %v1278, 0.0
          %v1295 = vmax.f32 %v1279, 0.0
          %v1296 = vmax.f32 %v1280, 0.0
          %1297 = vset.pattern.permute.xlu0 14
          %1298 = vperm.xlu0 %1297, %v230
          %v1299 = vpop.permute.xlu0 %1298
          %v1301 = vmul.f32 %v1299, %v1281
          %v1302 = vmul.f32 %v1299, %v1282
          %v1303 = vmul.f32 %v1299, %v1283
          %v1304 = vmul.f32 %v1299, %v1284
          %v1305 = vmul.f32 %v1299, %v1285
          %v1306 = vmul.f32 %v1299, %v1286
          %v1307 = vmul.f32 %v1299, %v1287
          %v1308 = vmul.f32 %v1299, %v1288
          %v1309 = vmul.f32 %v1299, %v1289
          %v1310 = vmul.f32 %v1299, %v1290
          %v1311 = vmul.f32 %v1299, %v1291
          %v1312 = vmul.f32 %v1299, %v1292
          %v1313 = vmul.f32 %v1299, %v1293
          %v1314 = vmul.f32 %v1299, %v1294
          %v1315 = vmul.f32 %v1299, %v1295
          %v1316 = vmul.f32 %v1299, %v1296
          %v1317 = vrot.slane %v1301, 4
          %v1318 = vadd.f32 %v1301, %v1317
          %v1319 = vrot.slane %v1318, 2
          %v1320 = vadd.f32 %v1318, %v1319
          %v1321 = vrot.slane %v1320, 1
          %v1322 = vadd.f32 %v1320, %v1321
          %v1323 = vrot.slane %v1302, 4
          %v1324 = vadd.f32 %v1302, %v1323
          %v1325 = vrot.slane %v1324, 2
          %v1326 = vadd.f32 %v1324, %v1325
          %v1327 = vrot.slane %v1326, 1
          %v1328 = vadd.f32 %v1326, %v1327
          %v1329 = vrot.slane %v1303, 4
          %v1330 = vadd.f32 %v1303, %v1329
          %v1331 = vrot.slane %v1330, 2
          %v1332 = vadd.f32 %v1330, %v1331
          %v1333 = vrot.slane %v1332, 1
          %v1334 = vadd.f32 %v1332, %v1333
          %v1335 = vrot.slane %v1304, 4
          %v1336 = vadd.f32 %v1304, %v1335
          %v1337 = vrot.slane %v1336, 2
          %v1338 = vadd.f32 %v1336, %v1337
          %v1339 = vrot.slane %v1338, 1
          %v1340 = vadd.f32 %v1338, %v1339
          %v1341 = vrot.slane %v1305, 4
          %v1342 = vadd.f32 %v1305, %v1341
          %v1343 = vrot.slane %v1342, 2
          %v1344 = vadd.f32 %v1342, %v1343
          %v1345 = vrot.slane %v1344, 1
          %v1346 = vadd.f32 %v1344, %v1345
          %v1347 = vrot.slane %v1306, 4
          %v1348 = vadd.f32 %v1306, %v1347
          %v1349 = vrot.slane %v1348, 2
          %v1350 = vadd.f32 %v1348, %v1349
          %v1351 = vrot.slane %v1350, 1
          %v1352 = vadd.f32 %v1350, %v1351
          %v1353 = vrot.slane %v1307, 4
          %v1354 = vadd.f32 %v1307, %v1353
          %v1355 = vrot.slane %v1354, 2
          %v1356 = vadd.f32 %v1354, %v1355
          %v1357 = vrot.slane %v1356, 1
          %v1358 = vadd.f32 %v1356, %v1357
          %v1359 = vrot.slane %v1308, 4
          %v1360 = vadd.f32 %v1308, %v1359
          %v1361 = vrot.slane %v1360, 2
          %v1362 = vadd.f32 %v1360, %v1361
          %v1363 = vrot.slane %v1362, 1
          %v1364 = vadd.f32 %v1362, %v1363
          %v1365 = vrot.slane %v1309, 4
          %v1366 = vadd.f32 %v1309, %v1365
          %v1367 = vrot.slane %v1366, 2
          %v1368 = vadd.f32 %v1366, %v1367
          %v1369 = vrot.slane %v1368, 1
          %v1370 = vadd.f32 %v1368, %v1369
          %v1371 = vrot.slane %v1310, 4
          %v1372 = vadd.f32 %v1310, %v1371
          %v1373 = vrot.slane %v1372, 2
          %v1374 = vadd.f32 %v1372, %v1373
          %v1375 = vrot.slane %v1374, 1
          %v1376 = vadd.f32 %v1374, %v1375
          %v1377 = vrot.slane %v1311, 4
          %v1378 = vadd.f32 %v1311, %v1377
          %v1379 = vrot.slane %v1378, 2
          %v1380 = vadd.f32 %v1378, %v1379
          %v1381 = vrot.slane %v1380, 1
          %v1382 = vadd.f32 %v1380, %v1381
          %v1383 = vrot.slane %v1312, 4
          %v1384 = vadd.f32 %v1312, %v1383
          %v1385 = vrot.slane %v1384, 2
          %v1386 = vadd.f32 %v1384, %v1385
          %v1387 = vrot.slane %v1386, 1
          %v1388 = vadd.f32 %v1386, %v1387
          %v1389 = vrot.slane %v1313, 4
          %v1390 = vadd.f32 %v1313, %v1389
          %v1391 = vrot.slane %v1390, 2
          %v1392 = vadd.f32 %v1390, %v1391
          %v1393 = vrot.slane %v1392, 1
          %v1394 = vadd.f32 %v1392, %v1393
          %v1395 = vrot.slane %v1314, 4
          %v1396 = vadd.f32 %v1314, %v1395
          %v1397 = vrot.slane %v1396, 2
          %v1398 = vadd.f32 %v1396, %v1397
          %v1399 = vrot.slane %v1398, 1
          %v1400 = vadd.f32 %v1398, %v1399
          %v1401 = vrot.slane %v1315, 4
          %v1402 = vadd.f32 %v1315, %v1401
          %v1403 = vrot.slane %v1402, 2
          %v1404 = vadd.f32 %v1402, %v1403
          %v1405 = vrot.slane %v1404, 1
          %v1406 = vadd.f32 %v1404, %v1405
          %v1407 = vrot.slane %v1316, 4
          %v1408 = vadd.f32 %v1316, %v1407
          %v1409 = vrot.slane %v1408, 2
          %v1410 = vadd.f32 %v1408, %v1409
          %v1411 = vrot.slane %v1410, 1
          %v1412 = vadd.f32 %v1410, %v1411
          %1413 = vset.pattern.permute.xlu0 15
          %1414 = vperm.xlu0 %1413, %v230
          %v1415 = vpop.permute.xlu0 %1414
          %v1417 = vadd.f32 %v1322, %v1415
          %v1418 = vadd.f32 %v1328, %v1415
          %v1419 = vadd.f32 %v1334, %v1415
          %v1420 = vadd.f32 %v1340, %v1415
          %v1421 = vadd.f32 %v1346, %v1415
          %v1422 = vadd.f32 %v1352, %v1415
          %v1423 = vadd.f32 %v1358, %v1415
          %v1424 = vadd.f32 %v1364, %v1415
          %v1425 = vadd.f32 %v1370, %v1415
          %v1426 = vadd.f32 %v1376, %v1415
          %v1427 = vadd.f32 %v1382, %v1415
          %v1428 = vadd.f32 %v1388, %v1415
          %v1429 = vadd.f32 %v1394, %v1415
          %v1430 = vadd.f32 %v1400, %v1415
          %v1431 = vadd.f32 %v1406, %v1415
          %v1432 = vadd.f32 %v1412, %v1415
          %v1433 = vld [vmem:[#allocation2] sm:$0x1]
          %vm1434 = vcmask 1040384
          %v1435 = vsel %vm1434, %v1417, 0.0
          %v1436 = vsel %vm1434, %v1418, 0.0
          %v1437 = vadd.f32 %v1435, %v1436
          %v1438 = vsel %vm1434, %v1419, 0.0
          %v1439 = vadd.f32 %v1437, %v1438
          %v1440 = vsel %vm1434, %v1420, 0.0
          %v1441 = vadd.f32 %v1439, %v1440
          %v1442 = vsel %vm1434, %v1421, 0.0
          %v1443 = vadd.f32 %v1441, %v1442
          %v1444 = vsel %vm1434, %v1422, 0.0
          %v1445 = vadd.f32 %v1443, %v1444
          %v1446 = vsel %vm1434, %v1423, 0.0
          %v1447 = vadd.f32 %v1445, %v1446
          %v1448 = vsel %vm1434, %v1424, 0.0
          %v1449 = vadd.f32 %v1447, %v1448
          %1450 = vadd.xlane.f32.xlu0 %v1449
          %v1451 = vpop.xlane.xlu0 %1450
          %v1452 = vsel %vm1434, %v1425, 0.0
          %v1453 = vsel %vm1434, %v1426, 0.0
          %v1454 = vadd.f32 %v1452, %v1453
          %v1455 = vsel %vm1434, %v1427, 0.0
          %v1456 = vadd.f32 %v1454, %v1455
          %v1457 = vsel %vm1434, %v1428, 0.0
          %v1458 = vadd.f32 %v1456, %v1457
          %v1459 = vsel %vm1434, %v1429, 0.0
          %v1460 = vadd.f32 %v1458, %v1459
          %v1461 = vsel %vm1434, %v1430, 0.0
          %v1462 = vadd.f32 %v1460, %v1461
          %v1463 = vsel %vm1434, %v1431, 0.0
          %v1464 = vadd.f32 %v1462, %v1463
          %v1465 = vsel %vm1434, %v1432, 0.0
          %v1466 = vadd.f32 %v1464, %v1465
          %1467 = vadd.xlane.f32.xlu0 %v1466
          %v1468 = vpop.xlane.xlu0 %1467
          %v1469 = vsel %vm1434, %v1451, 0.0
          %v1470 = vsel %vm1434, %v1468, 0.0
          %v1471 = vadd.f32 %v1469, %v1470
          %v1472 = vadd.f32 %v1433, %v1471
          %vm1473 = vcmask 32800
          %1474 = vst.msk [vmem:[#allocation2] sm:$0x1] %vm1473, %v1472
          %v1475 = vld [vmem:[#allocation2] sm:$0x1]
          %v1476 = vmul.f32 %v1417, %v1417
          %v1477 = vmul.f32 %v1418, %v1418
          %v1478 = vmul.f32 %v1419, %v1419
          %v1479 = vmul.f32 %v1420, %v1420
          %v1480 = vmul.f32 %v1421, %v1421
          %v1481 = vmul.f32 %v1422, %v1422
          %v1482 = vmul.f32 %v1423, %v1423
          %v1483 = vmul.f32 %v1424, %v1424
          %v1484 = vmul.f32 %v1425, %v1425
          %v1485 = vmul.f32 %v1426, %v1426
          %v1486 = vmul.f32 %v1427, %v1427
          %v1487 = vmul.f32 %v1428, %v1428
          %v1488 = vmul.f32 %v1429, %v1429
          %v1489 = vmul.f32 %v1430, %v1430
          %v1490 = vmul.f32 %v1431, %v1431
          %v1491 = vmul.f32 %v1432, %v1432
          %v1492 = vsel %vm1434, %v1476, 0.0
          %v1493 = vsel %vm1434, %v1477, 0.0
          %v1494 = vadd.f32 %v1492, %v1493
          %v1495 = vsel %vm1434, %v1478, 0.0
          %v1496 = vadd.f32 %v1494, %v1495
          %v1497 = vsel %vm1434, %v1479, 0.0
          %v1498 = vadd.f32 %v1496, %v1497
          %v1499 = vsel %vm1434, %v1480, 0.0
          %v1500 = vadd.f32 %v1498, %v1499
          %v1501 = vsel %vm1434, %v1481, 0.0
          %v1502 = vadd.f32 %v1500, %v1501
          %v1503 = vsel %vm1434, %v1482, 0.0
          %v1504 = vadd.f32 %v1502, %v1503
          %v1505 = vsel %vm1434, %v1483, 0.0
          %v1506 = vadd.f32 %v1504, %v1505
          %1507 = vadd.xlane.f32.xlu0 %v1506
          %v1508 = vpop.xlane.xlu0 %1507
          %v1509 = vsel %vm1434, %v1484, 0.0
          %v1510 = vsel %vm1434, %v1485, 0.0
          %v1511 = vadd.f32 %v1509, %v1510
          %v1512 = vsel %vm1434, %v1486, 0.0
          %v1513 = vadd.f32 %v1511, %v1512
          %v1514 = vsel %vm1434, %v1487, 0.0
          %v1515 = vadd.f32 %v1513, %v1514
          %v1516 = vsel %vm1434, %v1488, 0.0
          %v1517 = vadd.f32 %v1515, %v1516
          %v1518 = vsel %vm1434, %v1489, 0.0
          %v1519 = vadd.f32 %v1517, %v1518
          %v1520 = vsel %vm1434, %v1490, 0.0
          %v1521 = vadd.f32 %v1519, %v1520
          %v1522 = vsel %vm1434, %v1491, 0.0
          %v1523 = vadd.f32 %v1521, %v1522
          %1524 = vadd.xlane.f32.xlu0 %v1523
          %v1525 = vpop.xlane.xlu0 %1524
          %v1526 = vsel %vm1434, %v1508, 0.0
          %v1527 = vsel %vm1434, %v1525, 0.0
          %v1528 = vadd.f32 %v1526, %v1527
          %v1529 = vadd.f32 %v1475, %v1528
          %vm1530 = vcmask 41000
          %1531 = vst.msk [vmem:[#allocation2] sm:$0x1] %vm1530, %v1529
        $region56: #{tpu_custom_call.1} parent=31 // pred_fallthru
          _
        %p1532 = scmp.eq.s32.totalorder %s23, 2
        // Predicated region
        $region57: #{tpu_custom_call.1} parent=31 // pred_check
          %p1533 = pneg %p1532
        $region58: #{tpu_custom_call.1} parent=31 // pred_check_branch
          %1535 = sbr.rel (%p1533) target = $region60
        $region59: #{tpu_custom_call.1} parent=31 // pred_region
          %v1536 = vld [vmem:[#allocation2] sm:$0xff]
          %v1537 = vmul.f32 %v1536, 0.00048828125
          %v1538 = vmul.f32 %v1537, %v1537
          %1540 = vrot.lane.b32.xlu0 %v1538, 1
          %v1541 = vpop.permute.xlu0 %1540
          %v1543 = vsub.f32 %v1537, %v1541
          %v1544 = vmax.f32 %v1543, 0.0
          %1546 = vset.pattern.permute.xlu0 0
          %1547 = vperm.xlu0 %1546, %v1537
          %v1548 = vpop.permute.xlu0 %1547
          %v1550 = vsub.f32 %v580, %v1548
          %v1551 = vsub.f32 %v581, %v1548
          %v1552 = vsub.f32 %v582, %v1548
          %v1553 = vsub.f32 %v583, %v1548
          %v1554 = vsub.f32 %v584, %v1548
          %v1555 = vsub.f32 %v585, %v1548
          %v1556 = vsub.f32 %v586, %v1548
          %v1557 = vsub.f32 %v587, %v1548
          %v1558 = vsub.f32 %v588, %v1548
          %v1559 = vsub.f32 %v589, %v1548
          %v1560 = vsub.f32 %v590, %v1548
          %v1561 = vsub.f32 %v591, %v1548
          %v1562 = vsub.f32 %v592, %v1548
          %v1563 = vsub.f32 %v593, %v1548
          %v1564 = vsub.f32 %v594, %v1548
          %v1565 = vsub.f32 %v595, %v1548
          %v1566 = vadd.f32 %v1544, 1e-05
          %v1567 = vrsqrt.pop %v1566
          %v1568 = vmul.f32 %v1567, %v1566
          %v1569 = vmul.f32 %v1568, %v1567
          %v1570 = vmul.f32 0.5, %v1569
          %v1571 = vsub.f32 1.5, %v1570
          %v1572 = vmul.f32 %v1567, %v1571
          %vm1573 = vweird.f32 %v1566
          %vm1574 = vweird.f32 %v1567
          %vm1575 = vmor %vm1573, %vm1574
          %v1576 = vsel %vm1575, %v1567, %v1572
          %1578 = vset.pattern.permute.xlu0 1
          %1579 = vperm.xlu0 %1578, %v1576
          %v1580 = vpop.permute.xlu0 %1579
          %v1582 = vmul.f32 %v1550, %v1580
          %v1583 = vmul.f32 %v1551, %v1580
          %v1584 = vmul.f32 %v1552, %v1580
          %v1585 = vmul.f32 %v1553, %v1580
          %v1586 = vmul.f32 %v1554, %v1580
          %v1587 = vmul.f32 %v1555, %v1580
          %v1588 = vmul.f32 %v1556, %v1580
          %v1589 = vmul.f32 %v1557, %v1580
          %v1590 = vmul.f32 %v1558, %v1580
          %v1591 = vmul.f32 %v1559, %v1580
          %v1592 = vmul.f32 %v1560, %v1580
          %v1593 = vmul.f32 %v1561, %v1580
          %v1594 = vmul.f32 %v1562, %v1580
          %v1595 = vmul.f32 %v1563, %v1580
          %v1596 = vmul.f32 %v1564, %v1580
          %v1597 = vmul.f32 %v1565, %v1580
          %1598 = vset.pattern.permute.xlu0 9
          %1599 = vperm.xlu0 %1598, %v230
          %v1600 = vpop.permute.xlu0 %1599
          %v1602 = vmul.f32 %v1582, %v1600
          %v1603 = vmul.f32 %v1583, %v1600
          %v1604 = vmul.f32 %v1584, %v1600
          %v1605 = vmul.f32 %v1585, %v1600
          %v1606 = vmul.f32 %v1586, %v1600
          %v1607 = vmul.f32 %v1587, %v1600
          %v1608 = vmul.f32 %v1588, %v1600
          %v1609 = vmul.f32 %v1589, %v1600
          %v1610 = vmul.f32 %v1590, %v1600
          %v1611 = vmul.f32 %v1591, %v1600
          %v1612 = vmul.f32 %v1592, %v1600
          %v1613 = vmul.f32 %v1593, %v1600
          %v1614 = vmul.f32 %v1594, %v1600
          %v1615 = vmul.f32 %v1595, %v1600
          %v1616 = vmul.f32 %v1596, %v1600
          %v1617 = vmul.f32 %v1597, %v1600
          %1618 = vset.pattern.permute.xlu0 10
          %1619 = vperm.xlu0 %1618, %v230
          %v1620 = vpop.permute.xlu0 %1619
          %v1622 = vadd.f32 %v1602, %v1620
          %v1623 = vadd.f32 %v1603, %v1620
          %v1624 = vadd.f32 %v1604, %v1620
          %v1625 = vadd.f32 %v1605, %v1620
          %v1626 = vadd.f32 %v1606, %v1620
          %v1627 = vadd.f32 %v1607, %v1620
          %v1628 = vadd.f32 %v1608, %v1620
          %v1629 = vadd.f32 %v1609, %v1620
          %v1630 = vadd.f32 %v1610, %v1620
          %v1631 = vadd.f32 %v1611, %v1620
          %v1632 = vadd.f32 %v1612, %v1620
          %v1633 = vadd.f32 %v1613, %v1620
          %v1634 = vadd.f32 %v1614, %v1620
          %v1635 = vadd.f32 %v1615, %v1620
          %v1636 = vadd.f32 %v1616, %v1620
          %v1637 = vadd.f32 %v1617, %v1620
          %1638 = vset.pattern.permute.xlu0 2
          %1639 = vperm.xlu0 %1638, %v1537
          %v1640 = vpop.permute.xlu0 %1639
          %v1642 = vsub.f32 %v928, %v1640
          %v1643 = vsub.f32 %v929, %v1640
          %v1644 = vsub.f32 %v930, %v1640
          %v1645 = vsub.f32 %v931, %v1640
          %v1646 = vsub.f32 %v932, %v1640
          %v1647 = vsub.f32 %v933, %v1640
          %v1648 = vsub.f32 %v934, %v1640
          %v1649 = vsub.f32 %v935, %v1640
          %v1650 = vsub.f32 %v936, %v1640
          %v1651 = vsub.f32 %v937, %v1640
          %v1652 = vsub.f32 %v938, %v1640
          %v1653 = vsub.f32 %v939, %v1640
          %v1654 = vsub.f32 %v940, %v1640
          %v1655 = vsub.f32 %v941, %v1640
          %v1656 = vsub.f32 %v942, %v1640
          %v1657 = vsub.f32 %v943, %v1640
          %1658 = vset.pattern.permute.xlu0 3
          %1659 = vperm.xlu0 %1658, %v1576
          %v1660 = vpop.permute.xlu0 %1659
          %v1662 = vmul.f32 %v1642, %v1660
          %v1663 = vmul.f32 %v1643, %v1660
          %v1664 = vmul.f32 %v1644, %v1660
          %v1665 = vmul.f32 %v1645, %v1660
          %v1666 = vmul.f32 %v1646, %v1660
          %v1667 = vmul.f32 %v1647, %v1660
          %v1668 = vmul.f32 %v1648, %v1660
          %v1669 = vmul.f32 %v1649, %v1660
          %v1670 = vmul.f32 %v1650, %v1660
          %v1671 = vmul.f32 %v1651, %v1660
          %v1672 = vmul.f32 %v1652, %v1660
          %v1673 = vmul.f32 %v1653, %v1660
          %v1674 = vmul.f32 %v1654, %v1660
          %v1675 = vmul.f32 %v1655, %v1660
          %v1676 = vmul.f32 %v1656, %v1660
          %v1677 = vmul.f32 %v1657, %v1660
          %1678 = vset.pattern.permute.xlu0 12
          %1679 = vperm.xlu0 %1678, %v230
          %v1680 = vpop.permute.xlu0 %1679
          %v1682 = vmul.f32 %v1662, %v1680
          %v1683 = vmul.f32 %v1663, %v1680
          %v1684 = vmul.f32 %v1664, %v1680
          %v1685 = vmul.f32 %v1665, %v1680
          %v1686 = vmul.f32 %v1666, %v1680
          %v1687 = vmul.f32 %v1667, %v1680
          %v1688 = vmul.f32 %v1668, %v1680
          %v1689 = vmul.f32 %v1669, %v1680
          %v1690 = vmul.f32 %v1670, %v1680
          %v1691 = vmul.f32 %v1671, %v1680
          %v1692 = vmul.f32 %v1672, %v1680
          %v1693 = vmul.f32 %v1673, %v1680
          %v1694 = vmul.f32 %v1674, %v1680
          %v1695 = vmul.f32 %v1675, %v1680
          %v1696 = vmul.f32 %v1676, %v1680
          %v1697 = vmul.f32 %v1677, %v1680
          %1698 = vset.pattern.permute.xlu0 13
          %1699 = vperm.xlu0 %1698, %v230
          %v1700 = vpop.permute.xlu0 %1699
          %v1702 = vadd.f32 %v1682, %v1700
          %v1703 = vadd.f32 %v1683, %v1700
          %v1704 = vadd.f32 %v1684, %v1700
          %v1705 = vadd.f32 %v1685, %v1700
          %v1706 = vadd.f32 %v1686, %v1700
          %v1707 = vadd.f32 %v1687, %v1700
          %v1708 = vadd.f32 %v1688, %v1700
          %v1709 = vadd.f32 %v1689, %v1700
          %v1710 = vadd.f32 %v1690, %v1700
          %v1711 = vadd.f32 %v1691, %v1700
          %v1712 = vadd.f32 %v1692, %v1700
          %v1713 = vadd.f32 %v1693, %v1700
          %v1714 = vadd.f32 %v1694, %v1700
          %v1715 = vadd.f32 %v1695, %v1700
          %v1716 = vadd.f32 %v1696, %v1700
          %v1717 = vadd.f32 %v1697, %v1700
          %v1718 = vadd.f32 %v1622, %v1702
          %v1719 = vadd.f32 %v1623, %v1703
          %v1720 = vadd.f32 %v1624, %v1704
          %v1721 = vadd.f32 %v1625, %v1705
          %v1722 = vadd.f32 %v1626, %v1706
          %v1723 = vadd.f32 %v1627, %v1707
          %v1724 = vadd.f32 %v1628, %v1708
          %v1725 = vadd.f32 %v1629, %v1709
          %v1726 = vadd.f32 %v1630, %v1710
          %v1727 = vadd.f32 %v1631, %v1711
          %v1728 = vadd.f32 %v1632, %v1712
          %v1729 = vadd.f32 %v1633, %v1713
          %v1730 = vadd.f32 %v1634, %v1714
          %v1731 = vadd.f32 %v1635, %v1715
          %v1732 = vadd.f32 %v1636, %v1716
          %v1733 = vadd.f32 %v1637, %v1717
          %v1734 = vmax.f32 %v1718, 0.0
          %v1735 = vmax.f32 %v1719, 0.0
          %v1736 = vmax.f32 %v1720, 0.0
          %v1737 = vmax.f32 %v1721, 0.0
          %v1738 = vmax.f32 %v1722, 0.0
          %v1739 = vmax.f32 %v1723, 0.0
          %v1740 = vmax.f32 %v1724, 0.0
          %v1741 = vmax.f32 %v1725, 0.0
          %v1742 = vmax.f32 %v1726, 0.0
          %v1743 = vmax.f32 %v1727, 0.0
          %v1744 = vmax.f32 %v1728, 0.0
          %v1745 = vmax.f32 %v1729, 0.0
          %v1746 = vmax.f32 %v1730, 0.0
          %v1747 = vmax.f32 %v1731, 0.0
          %v1748 = vmax.f32 %v1732, 0.0
          %v1749 = vmax.f32 %v1733, 0.0
          %1750 = vset.pattern.permute.xlu0 14
          %1751 = vperm.xlu0 %1750, %v230
          %v1752 = vpop.permute.xlu0 %1751
          %v1754 = vmul.f32 %v1752, %v1734
          %v1755 = vmul.f32 %v1752, %v1735
          %v1756 = vmul.f32 %v1752, %v1736
          %v1757 = vmul.f32 %v1752, %v1737
          %v1758 = vmul.f32 %v1752, %v1738
          %v1759 = vmul.f32 %v1752, %v1739
          %v1760 = vmul.f32 %v1752, %v1740
          %v1761 = vmul.f32 %v1752, %v1741
          %v1762 = vmul.f32 %v1752, %v1742
          %v1763 = vmul.f32 %v1752, %v1743
          %v1764 = vmul.f32 %v1752, %v1744
          %v1765 = vmul.f32 %v1752, %v1745
          %v1766 = vmul.f32 %v1752, %v1746
          %v1767 = vmul.f32 %v1752, %v1747
          %v1768 = vmul.f32 %v1752, %v1748
          %v1769 = vmul.f32 %v1752, %v1749
          %v1770 = vrot.slane %v1754, 4
          %v1771 = vadd.f32 %v1754, %v1770
          %v1772 = vrot.slane %v1771, 2
          %v1773 = vadd.f32 %v1771, %v1772
          %v1774 = vrot.slane %v1773, 1
          %v1775 = vadd.f32 %v1773, %v1774
          %v1776 = vrot.slane %v1755, 4
          %v1777 = vadd.f32 %v1755, %v1776
          %v1778 = vrot.slane %v1777, 2
          %v1779 = vadd.f32 %v1777, %v1778
          %v1780 = vrot.slane %v1779, 1
          %v1781 = vadd.f32 %v1779, %v1780
          %v1782 = vrot.slane %v1756, 4
          %v1783 = vadd.f32 %v1756, %v1782
          %v1784 = vrot.slane %v1783, 2
          %v1785 = vadd.f32 %v1783, %v1784
          %v1786 = vrot.slane %v1785, 1
          %v1787 = vadd.f32 %v1785, %v1786
          %v1788 = vrot.slane %v1757, 4
          %v1789 = vadd.f32 %v1757, %v1788
          %v1790 = vrot.slane %v1789, 2
          %v1791 = vadd.f32 %v1789, %v1790
          %v1792 = vrot.slane %v1791, 1
          %v1793 = vadd.f32 %v1791, %v1792
          %v1794 = vrot.slane %v1758, 4
          %v1795 = vadd.f32 %v1758, %v1794
          %v1796 = vrot.slane %v1795, 2
          %v1797 = vadd.f32 %v1795, %v1796
          %v1798 = vrot.slane %v1797, 1
          %v1799 = vadd.f32 %v1797, %v1798
          %v1800 = vrot.slane %v1759, 4
          %v1801 = vadd.f32 %v1759, %v1800
          %v1802 = vrot.slane %v1801, 2
          %v1803 = vadd.f32 %v1801, %v1802
          %v1804 = vrot.slane %v1803, 1
          %v1805 = vadd.f32 %v1803, %v1804
          %v1806 = vrot.slane %v1760, 4
          %v1807 = vadd.f32 %v1760, %v1806
          %v1808 = vrot.slane %v1807, 2
          %v1809 = vadd.f32 %v1807, %v1808
          %v1810 = vrot.slane %v1809, 1
          %v1811 = vadd.f32 %v1809, %v1810
          %v1812 = vrot.slane %v1761, 4
          %v1813 = vadd.f32 %v1761, %v1812
          %v1814 = vrot.slane %v1813, 2
          %v1815 = vadd.f32 %v1813, %v1814
          %v1816 = vrot.slane %v1815, 1
          %v1817 = vadd.f32 %v1815, %v1816
          %v1818 = vrot.slane %v1762, 4
          %v1819 = vadd.f32 %v1762, %v1818
          %v1820 = vrot.slane %v1819, 2
          %v1821 = vadd.f32 %v1819, %v1820
          %v1822 = vrot.slane %v1821, 1
          %v1823 = vadd.f32 %v1821, %v1822
          %v1824 = vrot.slane %v1763, 4
          %v1825 = vadd.f32 %v1763, %v1824
          %v1826 = vrot.slane %v1825, 2
          %v1827 = vadd.f32 %v1825, %v1826
          %v1828 = vrot.slane %v1827, 1
          %v1829 = vadd.f32 %v1827, %v1828
          %v1830 = vrot.slane %v1764, 4
          %v1831 = vadd.f32 %v1764, %v1830
          %v1832 = vrot.slane %v1831, 2
          %v1833 = vadd.f32 %v1831, %v1832
          %v1834 = vrot.slane %v1833, 1
          %v1835 = vadd.f32 %v1833, %v1834
          %v1836 = vrot.slane %v1765, 4
          %v1837 = vadd.f32 %v1765, %v1836
          %v1838 = vrot.slane %v1837, 2
          %v1839 = vadd.f32 %v1837, %v1838
          %v1840 = vrot.slane %v1839, 1
          %v1841 = vadd.f32 %v1839, %v1840
          %v1842 = vrot.slane %v1766, 4
          %v1843 = vadd.f32 %v1766, %v1842
          %v1844 = vrot.slane %v1843, 2
          %v1845 = vadd.f32 %v1843, %v1844
          %v1846 = vrot.slane %v1845, 1
          %v1847 = vadd.f32 %v1845, %v1846
          %v1848 = vrot.slane %v1767, 4
          %v1849 = vadd.f32 %v1767, %v1848
          %v1850 = vrot.slane %v1849, 2
          %v1851 = vadd.f32 %v1849, %v1850
          %v1852 = vrot.slane %v1851, 1
          %v1853 = vadd.f32 %v1851, %v1852
          %v1854 = vrot.slane %v1768, 4
          %v1855 = vadd.f32 %v1768, %v1854
          %v1856 = vrot.slane %v1855, 2
          %v1857 = vadd.f32 %v1855, %v1856
          %v1858 = vrot.slane %v1857, 1
          %v1859 = vadd.f32 %v1857, %v1858
          %v1860 = vrot.slane %v1769, 4
          %v1861 = vadd.f32 %v1769, %v1860
          %v1862 = vrot.slane %v1861, 2
          %v1863 = vadd.f32 %v1861, %v1862
          %v1864 = vrot.slane %v1863, 1
          %v1865 = vadd.f32 %v1863, %v1864
          %1866 = vset.pattern.permute.xlu0 15
          %1867 = vperm.xlu0 %1866, %v230
          %v1868 = vpop.permute.xlu0 %1867
          %v1870 = vadd.f32 %v1775, %v1868
          %v1871 = vadd.f32 %v1781, %v1868
          %v1872 = vadd.f32 %v1787, %v1868
          %v1873 = vadd.f32 %v1793, %v1868
          %v1874 = vadd.f32 %v1799, %v1868
          %v1875 = vadd.f32 %v1805, %v1868
          %v1876 = vadd.f32 %v1811, %v1868
          %v1877 = vadd.f32 %v1817, %v1868
          %v1878 = vadd.f32 %v1823, %v1868
          %v1879 = vadd.f32 %v1829, %v1868
          %v1880 = vadd.f32 %v1835, %v1868
          %v1881 = vadd.f32 %v1841, %v1868
          %v1882 = vadd.f32 %v1847, %v1868
          %v1883 = vadd.f32 %v1853, %v1868
          %v1884 = vadd.f32 %v1859, %v1868
          %v1885 = vadd.f32 %v1865, %v1868
          %1886 = vset.pattern.permute.xlu0 4
          %1887 = vperm.xlu0 %1886, %v1537
          %v1888 = vpop.permute.xlu0 %1887
          %v1890 = vsub.f32 %v1870, %v1888
          %v1891 = vsub.f32 %v1871, %v1888
          %v1892 = vsub.f32 %v1872, %v1888
          %v1893 = vsub.f32 %v1873, %v1888
          %v1894 = vsub.f32 %v1874, %v1888
          %v1895 = vsub.f32 %v1875, %v1888
          %v1896 = vsub.f32 %v1876, %v1888
          %v1897 = vsub.f32 %v1877, %v1888
          %v1898 = vsub.f32 %v1878, %v1888
          %v1899 = vsub.f32 %v1879, %v1888
          %v1900 = vsub.f32 %v1880, %v1888
          %v1901 = vsub.f32 %v1881, %v1888
          %v1902 = vsub.f32 %v1882, %v1888
          %v1903 = vsub.f32 %v1883, %v1888
          %v1904 = vsub.f32 %v1884, %v1888
          %v1905 = vsub.f32 %v1885, %v1888
          %1906 = vset.pattern.permute.xlu0 5
          %1907 = vperm.xlu0 %1906, %v1576
          %v1908 = vpop.permute.xlu0 %1907
          %v1910 = vmul.f32 %v1890, %v1908
          %v1911 = vmul.f32 %v1891, %v1908
          %v1912 = vmul.f32 %v1892, %v1908
          %v1913 = vmul.f32 %v1893, %v1908
          %v1914 = vmul.f32 %v1894, %v1908
          %v1915 = vmul.f32 %v1895, %v1908
          %v1916 = vmul.f32 %v1896, %v1908
          %v1917 = vmul.f32 %v1897, %v1908
          %v1918 = vmul.f32 %v1898, %v1908
          %v1919 = vmul.f32 %v1899, %v1908
          %v1920 = vmul.f32 %v1900, %v1908
          %v1921 = vmul.f32 %v1901, %v1908
          %v1922 = vmul.f32 %v1902, %v1908
          %v1923 = vmul.f32 %v1903, %v1908
          %v1924 = vmul.f32 %v1904, %v1908
          %v1925 = vmul.f32 %v1905, %v1908
          %1926 = vset.pattern.permute.xlu0 16
          %1927 = vperm.xlu0 %1926, %v230
          %v1928 = vpop.permute.xlu0 %1927
          %v1930 = vmul.f32 %v1910, %v1928
          %v1931 = vmul.f32 %v1911, %v1928
          %v1932 = vmul.f32 %v1912, %v1928
          %v1933 = vmul.f32 %v1913, %v1928
          %v1934 = vmul.f32 %v1914, %v1928
          %v1935 = vmul.f32 %v1915, %v1928
          %v1936 = vmul.f32 %v1916, %v1928
          %v1937 = vmul.f32 %v1917, %v1928
          %v1938 = vmul.f32 %v1918, %v1928
          %v1939 = vmul.f32 %v1919, %v1928
          %v1940 = vmul.f32 %v1920, %v1928
          %v1941 = vmul.f32 %v1921, %v1928
          %v1942 = vmul.f32 %v1922, %v1928
          %v1943 = vmul.f32 %v1923, %v1928
          %v1944 = vmul.f32 %v1924, %v1928
          %v1945 = vmul.f32 %v1925, %v1928
          %1946 = vset.pattern.permute.xlu0 17
          %1947 = vperm.xlu0 %1946, %v230
          %v1948 = vpop.permute.xlu0 %1947
          %v1950 = vadd.f32 %v1930, %v1948
          %v1951 = vadd.f32 %v1931, %v1948
          %v1952 = vadd.f32 %v1932, %v1948
          %v1953 = vadd.f32 %v1933, %v1948
          %v1954 = vadd.f32 %v1934, %v1948
          %v1955 = vadd.f32 %v1935, %v1948
          %v1956 = vadd.f32 %v1936, %v1948
          %v1957 = vadd.f32 %v1937, %v1948
          %v1958 = vadd.f32 %v1938, %v1948
          %v1959 = vadd.f32 %v1939, %v1948
          %v1960 = vadd.f32 %v1940, %v1948
          %v1961 = vadd.f32 %v1941, %v1948
          %v1962 = vadd.f32 %v1942, %v1948
          %v1963 = vadd.f32 %v1943, %v1948
          %v1964 = vadd.f32 %v1944, %v1948
          %v1965 = vadd.f32 %v1945, %v1948
          %v1966 = vsub.f32 0.0, %v1950
          %v1967 = vsub.f32 0.0, %v1951
          %v1968 = vsub.f32 0.0, %v1952
          %v1969 = vsub.f32 0.0, %v1953
          %v1970 = vsub.f32 0.0, %v1954
          %v1971 = vsub.f32 0.0, %v1955
          %v1972 = vsub.f32 0.0, %v1956
          %v1973 = vsub.f32 0.0, %v1957
          %v1974 = vsub.f32 0.0, %v1958
          %v1975 = vsub.f32 0.0, %v1959
          %v1976 = vsub.f32 0.0, %v1960
          %v1977 = vsub.f32 0.0, %v1961
          %v1978 = vsub.f32 0.0, %v1962
          %v1979 = vsub.f32 0.0, %v1963
          %v1980 = vsub.f32 0.0, %v1964
          %v1981 = vsub.f32 0.0, %v1965
          %v1982 = vmul.f32 %v1966, 1.442695
          %v1983 = vpow.pop %v1982
          %v1984 = vmul.f32 %v1967, 1.442695
          %v1985 = vpow.pop %v1984
          %v1986 = vmul.f32 %v1968, 1.442695
          %v1987 = vpow.pop %v1986
          %v1988 = vmul.f32 %v1969, 1.442695
          %v1989 = vpow.pop %v1988
          %v1990 = vmul.f32 %v1970, 1.442695
          %v1991 = vpow.pop %v1990
          %v1992 = vmul.f32 %v1971, 1.442695
          %v1993 = vpow.pop %v1992
          %v1994 = vmul.f32 %v1972, 1.442695
          %v1995 = vpow.pop %v1994
          %v1996 = vmul.f32 %v1973, 1.442695
          %v1997 = vpow.pop %v1996
          %v1998 = vmul.f32 %v1974, 1.442695
          %v1999 = vpow.pop %v1998
          %v2000 = vmul.f32 %v1975, 1.442695
          %v2001 = vpow.pop %v2000
          %v2002 = vmul.f32 %v1976, 1.442695
          %v2003 = vpow.pop %v2002
          %v2004 = vmul.f32 %v1977, 1.442695
          %v2005 = vpow.pop %v2004
          %v2006 = vmul.f32 %v1978, 1.442695
          %v2007 = vpow.pop %v2006
          %v2008 = vmul.f32 %v1979, 1.442695
          %v2009 = vpow.pop %v2008
          %v2010 = vmul.f32 %v1980, 1.442695
          %v2011 = vpow.pop %v2010
          %v2012 = vmul.f32 %v1981, 1.442695
          %v2013 = vpow.pop %v2012
          %v2014 = vadd.f32 %v1983, 1.0
          %v2015 = vadd.f32 %v1985, 1.0
          %v2016 = vadd.f32 %v1987, 1.0
          %v2017 = vadd.f32 %v1989, 1.0
          %v2018 = vadd.f32 %v1991, 1.0
          %v2019 = vadd.f32 %v1993, 1.0
          %v2020 = vadd.f32 %v1995, 1.0
          %v2021 = vadd.f32 %v1997, 1.0
          %v2022 = vadd.f32 %v1999, 1.0
          %v2023 = vadd.f32 %v2001, 1.0
          %v2024 = vadd.f32 %v2003, 1.0
          %v2025 = vadd.f32 %v2005, 1.0
          %v2026 = vadd.f32 %v2007, 1.0
          %v2027 = vadd.f32 %v2009, 1.0
          %v2028 = vadd.f32 %v2011, 1.0
          %v2029 = vadd.f32 %v2013, 1.0
          %v2030 = vrcp.pop %v2014
          %v2031 = vmul.f32 %v2014, %v2030
          %v2032 = vsub.f32 1.0, %v2031
          %v2033 = vmul.f32 %v2030, %v2032
          %v2034 = vadd.f32 %v2030, %v2033
          %vm2035 = vweird.f32 %v2014
          %vm2036 = vweird.f32 %v2030
          %vm2037 = vmor %vm2035, %vm2036
          %v2038 = vsel %vm2037, %v2030, %v2034
          %v2039 = vand.u32 2147483647, %v2014
          %vm2040 = vcmp.eq.f32.partialorder %v2039, 8.507059e+37
          %v2041 = vand.u32 %v2014, 2147483648
          %v2042 = vor.u32 1.1754944e-38, %v2041
          %v2043 = vsel %vm2040, %v2042, %v2038
          %v2044 = vrcp.pop %v2015
          %v2045 = vmul.f32 %v2015, %v2044
          %v2046 = vsub.f32 1.0, %v2045
          %v2047 = vmul.f32 %v2044, %v2046
          %v2048 = vadd.f32 %v2044, %v2047
          %vm2049 = vweird.f32 %v2015
          %vm2050 = vweird.f32 %v2044
          %vm2051 = vmor %vm2049, %vm2050
          %v2052 = vsel %vm2051, %v2044, %v2048
          %v2053 = vand.u32 2147483647, %v2015
          %vm2054 = vcmp.eq.f32.partialorder %v2053, 8.507059e+37
          %v2055 = vand.u32 %v2015, 2147483648
          %v2056 = vor.u32 1.1754944e-38, %v2055
          %v2057 = vsel %vm2054, %v2056, %v2052
          %v2058 = vrcp.pop %v2016
          %v2059 = vmul.f32 %v2016, %v2058
          %v2060 = vsub.f32 1.0, %v2059
          %v2061 = vmul.f32 %v2058, %v2060
          %v2062 = vadd.f32 %v2058, %v2061
          %vm2063 = vweird.f32 %v2016
          %vm2064 = vweird.f32 %v2058
          %vm2065 = vmor %vm2063, %vm2064
          %v2066 = vsel %vm2065, %v2058, %v2062
          %v2067 = vand.u32 2147483647, %v2016
          %vm2068 = vcmp.eq.f32.partialorder %v2067, 8.507059e+37
          %v2069 = vand.u32 %v2016, 2147483648
          %v2070 = vor.u32 1.1754944e-38, %v2069
          %v2071 = vsel %vm2068, %v2070, %v2066
          %v2072 = vrcp.pop %v2017
          %v2073 = vmul.f32 %v2017, %v2072
          %v2074 = vsub.f32 1.0, %v2073
          %v2075 = vmul.f32 %v2072, %v2074
          %v2076 = vadd.f32 %v2072, %v2075
          %vm2077 = vweird.f32 %v2017
          %vm2078 = vweird.f32 %v2072
          %vm2079 = vmor %vm2077, %vm2078
          %v2080 = vsel %vm2079, %v2072, %v2076
          %v2081 = vand.u32 2147483647, %v2017
          %vm2082 = vcmp.eq.f32.partialorder %v2081, 8.507059e+37
          %v2083 = vand.u32 %v2017, 2147483648
          %v2084 = vor.u32 1.1754944e-38, %v2083
          %v2085 = vsel %vm2082, %v2084, %v2080
          %v2086 = vrcp.pop %v2018
          %v2087 = vmul.f32 %v2018, %v2086
          %v2088 = vsub.f32 1.0, %v2087
          %v2089 = vmul.f32 %v2086, %v2088
          %v2090 = vadd.f32 %v2086, %v2089
          %vm2091 = vweird.f32 %v2018
          %vm2092 = vweird.f32 %v2086
          %vm2093 = vmor %vm2091, %vm2092
          %v2094 = vsel %vm2093, %v2086, %v2090
          %v2095 = vand.u32 2147483647, %v2018
          %vm2096 = vcmp.eq.f32.partialorder %v2095, 8.507059e+37
          %v2097 = vand.u32 %v2018, 2147483648
          %v2098 = vor.u32 1.1754944e-38, %v2097
          %v2099 = vsel %vm2096, %v2098, %v2094
          %v2100 = vrcp.pop %v2019
          %v2101 = vmul.f32 %v2019, %v2100
          %v2102 = vsub.f32 1.0, %v2101
          %v2103 = vmul.f32 %v2100, %v2102
          %v2104 = vadd.f32 %v2100, %v2103
          %vm2105 = vweird.f32 %v2019
          %vm2106 = vweird.f32 %v2100
          %vm2107 = vmor %vm2105, %vm2106
          %v2108 = vsel %vm2107, %v2100, %v2104
          %v2109 = vand.u32 2147483647, %v2019
          %vm2110 = vcmp.eq.f32.partialorder %v2109, 8.507059e+37
          %v2111 = vand.u32 %v2019, 2147483648
          %v2112 = vor.u32 1.1754944e-38, %v2111
          %v2113 = vsel %vm2110, %v2112, %v2108
          %v2114 = vrcp.pop %v2020
          %v2115 = vmul.f32 %v2020, %v2114
          %v2116 = vsub.f32 1.0, %v2115
          %v2117 = vmul.f32 %v2114, %v2116
          %v2118 = vadd.f32 %v2114, %v2117
          %vm2119 = vweird.f32 %v2020
          %vm2120 = vweird.f32 %v2114
          %vm2121 = vmor %vm2119, %vm2120
          %v2122 = vsel %vm2121, %v2114, %v2118
          %v2123 = vand.u32 2147483647, %v2020
          %vm2124 = vcmp.eq.f32.partialorder %v2123, 8.507059e+37
          %v2125 = vand.u32 %v2020, 2147483648
          %v2126 = vor.u32 1.1754944e-38, %v2125
          %v2127 = vsel %vm2124, %v2126, %v2122
          %v2128 = vrcp.pop %v2021
          %v2129 = vmul.f32 %v2021, %v2128
          %v2130 = vsub.f32 1.0, %v2129
          %v2131 = vmul.f32 %v2128, %v2130
          %v2132 = vadd.f32 %v2128, %v2131
          %vm2133 = vweird.f32 %v2021
          %vm2134 = vweird.f32 %v2128
          %vm2135 = vmor %vm2133, %vm2134
          %v2136 = vsel %vm2135, %v2128, %v2132
          %v2137 = vand.u32 2147483647, %v2021
          %vm2138 = vcmp.eq.f32.partialorder %v2137, 8.507059e+37
          %v2139 = vand.u32 %v2021, 2147483648
          %v2140 = vor.u32 1.1754944e-38, %v2139
          %v2141 = vsel %vm2138, %v2140, %v2136
          %v2142 = vrcp.pop %v2022
          %v2143 = vmul.f32 %v2022, %v2142
          %v2144 = vsub.f32 1.0, %v2143
          %v2145 = vmul.f32 %v2142, %v2144
          %v2146 = vadd.f32 %v2142, %v2145
          %vm2147 = vweird.f32 %v2022
          %vm2148 = vweird.f32 %v2142
          %vm2149 = vmor %vm2147, %vm2148
          %v2150 = vsel %vm2149, %v2142, %v2146
          %v2151 = vand.u32 2147483647, %v2022
          %vm2152 = vcmp.eq.f32.partialorder %v2151, 8.507059e+37
          %v2153 = vand.u32 %v2022, 2147483648
          %v2154 = vor.u32 1.1754944e-38, %v2153
          %v2155 = vsel %vm2152, %v2154, %v2150
          %v2156 = vrcp.pop %v2023
          %v2157 = vmul.f32 %v2023, %v2156
          %v2158 = vsub.f32 1.0, %v2157
          %v2159 = vmul.f32 %v2156, %v2158
          %v2160 = vadd.f32 %v2156, %v2159
          %vm2161 = vweird.f32 %v2023
          %vm2162 = vweird.f32 %v2156
          %vm2163 = vmor %vm2161, %vm2162
          %v2164 = vsel %vm2163, %v2156, %v2160
          %v2165 = vand.u32 2147483647, %v2023
          %vm2166 = vcmp.eq.f32.partialorder %v2165, 8.507059e+37
          %v2167 = vand.u32 %v2023, 2147483648
          %v2168 = vor.u32 1.1754944e-38, %v2167
          %v2169 = vsel %vm2166, %v2168, %v2164
          %v2170 = vrcp.pop %v2024
          %v2171 = vmul.f32 %v2024, %v2170
          %v2172 = vsub.f32 1.0, %v2171
          %v2173 = vmul.f32 %v2170, %v2172
          %v2174 = vadd.f32 %v2170, %v2173
          %vm2175 = vweird.f32 %v2024
          %vm2176 = vweird.f32 %v2170
          %vm2177 = vmor %vm2175, %vm2176
          %v2178 = vsel %vm2177, %v2170, %v2174
          %v2179 = vand.u32 2147483647, %v2024
          %vm2180 = vcmp.eq.f32.partialorder %v2179, 8.507059e+37
          %v2181 = vand.u32 %v2024, 2147483648
          %v2182 = vor.u32 1.1754944e-38, %v2181
          %v2183 = vsel %vm2180, %v2182, %v2178
          %v2184 = vrcp.pop %v2025
          %v2185 = vmul.f32 %v2025, %v2184
          %v2186 = vsub.f32 1.0, %v2185
          %v2187 = vmul.f32 %v2184, %v2186
          %v2188 = vadd.f32 %v2184, %v2187
          %vm2189 = vweird.f32 %v2025
          %vm2190 = vweird.f32 %v2184
          %vm2191 = vmor %vm2189, %vm2190
          %v2192 = vsel %vm2191, %v2184, %v2188
          %v2193 = vand.u32 2147483647, %v2025
          %vm2194 = vcmp.eq.f32.partialorder %v2193, 8.507059e+37
          %v2195 = vand.u32 %v2025, 2147483648
          %v2196 = vor.u32 1.1754944e-38, %v2195
          %v2197 = vsel %vm2194, %v2196, %v2192
          %v2198 = vrcp.pop %v2026
          %v2199 = vmul.f32 %v2026, %v2198
          %v2200 = vsub.f32 1.0, %v2199
          %v2201 = vmul.f32 %v2198, %v2200
          %v2202 = vadd.f32 %v2198, %v2201
          %vm2203 = vweird.f32 %v2026
          %vm2204 = vweird.f32 %v2198
          %vm2205 = vmor %vm2203, %vm2204
          %v2206 = vsel %vm2205, %v2198, %v2202
          %v2207 = vand.u32 2147483647, %v2026
          %vm2208 = vcmp.eq.f32.partialorder %v2207, 8.507059e+37
          %v2209 = vand.u32 %v2026, 2147483648
          %v2210 = vor.u32 1.1754944e-38, %v2209
          %v2211 = vsel %vm2208, %v2210, %v2206
          %v2212 = vrcp.pop %v2027
          %v2213 = vmul.f32 %v2027, %v2212
          %v2214 = vsub.f32 1.0, %v2213
          %v2215 = vmul.f32 %v2212, %v2214
          %v2216 = vadd.f32 %v2212, %v2215
          %vm2217 = vweird.f32 %v2027
          %vm2218 = vweird.f32 %v2212
          %vm2219 = vmor %vm2217, %vm2218
          %v2220 = vsel %vm2219, %v2212, %v2216
          %v2221 = vand.u32 2147483647, %v2027
          %vm2222 = vcmp.eq.f32.partialorder %v2221, 8.507059e+37
          %v2223 = vand.u32 %v2027, 2147483648
          %v2224 = vor.u32 1.1754944e-38, %v2223
          %v2225 = vsel %vm2222, %v2224, %v2220
          %v2226 = vrcp.pop %v2028
          %v2227 = vmul.f32 %v2028, %v2226
          %v2228 = vsub.f32 1.0, %v2227
          %v2229 = vmul.f32 %v2226, %v2228
          %v2230 = vadd.f32 %v2226, %v2229
          %vm2231 = vweird.f32 %v2028
          %vm2232 = vweird.f32 %v2226
          %vm2233 = vmor %vm2231, %vm2232
          %v2234 = vsel %vm2233, %v2226, %v2230
          %v2235 = vand.u32 2147483647, %v2028
          %vm2236 = vcmp.eq.f32.partialorder %v2235, 8.507059e+37
          %v2237 = vand.u32 %v2028, 2147483648
          %v2238 = vor.u32 1.1754944e-38, %v2237
          %v2239 = vsel %vm2236, %v2238, %v2234
          %v2240 = vrcp.pop %v2029
          %v2241 = vmul.f32 %v2029, %v2240
          %v2242 = vsub.f32 1.0, %v2241
          %v2243 = vmul.f32 %v2240, %v2242
          %v2244 = vadd.f32 %v2240, %v2243
          %vm2245 = vweird.f32 %v2029
          %vm2246 = vweird.f32 %v2240
          %vm2247 = vmor %vm2245, %vm2246
          %v2248 = vsel %vm2247, %v2240, %v2244
          %v2249 = vand.u32 2147483647, %v2029
          %vm2250 = vcmp.eq.f32.partialorder %v2249, 8.507059e+37
          %v2251 = vand.u32 %v2029, 2147483648
          %v2252 = vor.u32 1.1754944e-38, %v2251
          %v2253 = vsel %vm2250, %v2252, %v2248
          %v2270 = vrot.slane %v2057, 7
          %v2271 = vrot.slane %v2071, 6
          %v2272 = vrot.slane %v2085, 5
          %v2273 = vrot.slane %v2099, 4
          %v2274 = vrot.slane %v2113, 3
          %v2275 = vrot.slane %v2127, 2
          %v2276 = vrot.slane %v2141, 1
          %v2277 = vrot.slane %v2169, 7
          %v2278 = vrot.slane %v2183, 6
          %v2279 = vrot.slane %v2197, 5
          %v2280 = vrot.slane %v2211, 4
          %v2281 = vrot.slane %v2225, 3
          %v2282 = vrot.slane %v2239, 2
          %v2283 = vrot.slane %v2253, 1
          %vm2284 = vcmask 1040384
          %v2285 = vsel %vm2284, %v2043, %v2270
          %vm2286 = vcmask 1042434
          %v2287 = vsel %vm2286, %v2271, %v2272
          %vm2288 = vcmask 1041408
          %v2289 = vsel %vm2288, %v2285, %v2287
          %vm2290 = vcmask 1044484
          %v2291 = vsel %vm2290, %v2273, %v2274
          %vm2292 = vcmask 1046534
          %v2293 = vsel %vm2292, %v2275, %v2276
          %vm2294 = vcmask 1045508
          %v2295 = vsel %vm2294, %v2291, %v2293
          %vm2296 = vcmask 1043456
          %v2297 = vsel %vm2296, %v2289, %v2295
          %v2298 = vsel %vm2284, %v2155, %v2277
          %v2299 = vsel %vm2286, %v2278, %v2279
          %v2300 = vsel %vm2288, %v2298, %v2299
          %v2301 = vsel %vm2290, %v2280, %v2281
          %v2302 = vsel %vm2292, %v2282, %v2283
          %v2303 = vsel %vm2294, %v2301, %v2302
          %v2304 = vsel %vm2296, %v2300, %v2303
          %2307 = vst [vmem:[%s226] sm:$0xff] %v2297
          %2308 = vst [vmem:[%s226 + $0x8] sm:$0xff] %v2304
        $region60: #{tpu_custom_call.1} parent=31 // pred_fallthru
          _
        %s2309 = sand.u32 %s114, 1
        %s2310 = scalar_lea.sflag [#allocation5], %s2309
        %s2311 = sand.u32 %s114, 1
        %s2312 = smul.addr %s2311, 16
        %s2313 = scalar_lea.vmem [#allocation9], %s2312
        // Predicated region
        $region61: #{tpu_custom_call.1} parent=31 // pred_check
          %p2314 = pneg %p124
        $region62: #{tpu_custom_call.1} parent=31 // pred_check_branch
          %2316 = sbr.rel (%p2314) target = $region64
        $region63: #{tpu_custom_call.1} parent=31 // pred_region
          %s2317 = smul.u32 8, %s24
          %2319 = vsyncadd %s2310, 0
          %s2320 = smul.addr %s23, 16
          %s2321 = sadd.s32 %s2317, %s2320
          %s2322 = scalar_lea.hbm %s3, %s2321
          %s2323 = sshll.u32 %s2313, 4
          %s2324 = int_to_ptr.vmem [resolvable:$true] %s2323
          %s2325 = sshll.u32 %s2322, 4
          %s2326 = int_to_ptr.hbm [resolvable:$true] %s2325
          %2331 = dma.vmem_to_hbm [thread:$0]  %s2324, 256, %s2326, %s2310, 128, 128, 8
        $region64: #{tpu_custom_call.1} parent=31 // pred_fallthru
          _
      $region32: #{tpu_custom_call.1} parent=5 // pred_fallthru
        _
      %p2332 = scmp.le.s32.totalorder 2, %s14
      // Predicated region
      $region65: #{tpu_custom_call.1} parent=5 // pred_check
        %p2333 = pneg %p2332
      $region66: #{tpu_custom_call.1} parent=5 // pred_check_branch
        %2335 = sbr.rel (%p2333) target = $region68
      $region67: #{tpu_custom_call.1} parent=5 // pred_region
        %s2336 = ssub.s32 %s14, 2
        // Predicated region
        $region69: #{tpu_custom_call.1} parent=67 // pred_check
          %p2337 = pneg %p130
        $region70: #{tpu_custom_call.1} parent=67 // pred_check_branch
          %2339 = sbr.rel (%p2337) target = $region72
        $region71: #{tpu_custom_call.1} parent=67 // pred_region
          %s2340 = sand.u32 %s115, 1
          %s2341 = scalar_lea.sflag [#allocation5], %s2340
          %s2342 = sand.u32 %s115, 1
          %s2343 = smul.addr %s2342, 16
          %s2344 = scalar_lea.vmem [#allocation9], %s2343
          %2346 = dma.done %s2341, 256
        $region72: #{tpu_custom_call.1} parent=67 // pred_fallthru
          _
      $region68: #{tpu_custom_call.1} parent=5 // pred_fallthru
        _
    $region6: #{tpu_custom_call.1} parent=1 // loop_footer
      %s18 = sadd.s32 1, %s14
    $region7: #{tpu_custom_call.1} parent=1 // loop_footer_branch
      %13 = sbr.rel target = $region3
    $region8: #{tpu_custom_call.1} parent=1 // loop_exit
      _
    %2347 = vsyncpa [#allocation4], 1
    %s2348 = scalar_lea.sflag [#allocation4], 1
    %2349 = vsyncpa %s2348, 1
    %2350 = vsyncpa [#allocation7], 1
    %2351 = vsyncpa [#allocation5], 1
    %s2352 = scalar_lea.sflag [#allocation5], 1
    %2353 = vsyncpa %s2352, 1

</llo_original>
